<compile_context>
chip_gen: v7x
topology: tpu7x:2x2x1
jax: 0.10.0
libtpu: 0.0.40
codegen_flags: <defaults>
</compile_context>

<pallas_src>
import jax
import jax.numpy as jnp
from jax import lax
from jax.experimental import pallas as pl
from jax.experimental.pallas import tpu as pltpu

# ---- small, forward-consistent synthetic sizes ------------------------------
B = 2            # batch
S = 8            # sequence length
H = 32           # hidden_size (768 in the real model)
FFN = 128        # intermediate size (4 * H)
C = 7            # num_classes
OUT_PAD = 128    # lane-dense padded logits width
NUM_HEADS = 2
HEAD_DIM = H // NUM_HEADS
VOCAB = 50
TYPE_VOCAB = 2
LN_EPS = 1e-12

# ---- packed weight slab layout (f32, lane width 128) ------------------------
WQ_R = 0                  # wq                (H, H)       cols 0:H
WKVT_R = WQ_R + H         # [wk.T ; wv.T]     (2H, H)      cols 0:H
BKVT_R = WKVT_R + 2 * H   # [bk ; bv]         (2H, 1)      col 0
WO_R = BKVT_R + 2 * H     # wo                (H, H)       cols 0:H
W1_R = WO_R + H           # w1                (H, FFN)     cols 0:FFN
W2_R = W1_R + H           # w2                (FFN, H)     cols 0:H
WP_R = W2_R + FFN         # wp                (H, H)       cols 0:H
WC_R = WP_R + H           # wc (lane-padded)  (H, OUT_PAD)
W_ROWS = WC_R + H         # = 416

# ---- packed bias slab rows (f32, lane width 128) -----------------------------
BQ_ROW, BO_ROW, LN1G_ROW, LN1B_ROW = 0, 1, 2, 3
B1_ROW, B2_ROW, LN2G_ROW, LN2B_ROW = 4, 5, 6, 7
BP_ROW, BC_ROW = 8, 9
B_ROWS = 16


def _layer_norm(x, g, b):
    mu = jnp.mean(x, axis=-1, keepdims=True)
    var = jnp.mean((x - mu) ** 2, axis=-1, keepdims=True)
    return (x - mu) * lax.rsqrt(var + LN_EPS) * g + b


def bert_classifier_kernel(vlen_ref, x_ref, w_ref, b_ref, out_ref):
    """One program per batch element (grid=(B,))."""
    b = pl.program_id(0)
    x = x_ref[0]                                                    # (S, H)

    # ---- gen_attention_mask: attention_mask[b, :valid_length[b]] = 1 --------
    key_pos = lax.broadcasted_iota(jnp.int32, (1, S), 1)
    key_mask = (key_pos < vlen_ref[b]).astype(jnp.float32)         # (1, S)
    attn_bias = (key_mask - 1.0) * 1.0e4                           # 0 valid / -1e4 pad
    # NOTE: assumes valid_length >= 1 (CLS token always valid), as in the real model.

    # ---- self-attention ------------------------------------------------------
    # Q in row-major (S, H); K/V fused, feature-major (2H, S) so per-head K/V
    # slices are free sublane slices.
    wq = w_ref[WQ_R:WQ_R + H, 0:H]
    bq = b_ref[BQ_ROW:BQ_ROW + 1, 0:H]
    q = jnp.dot(x, wq, preferred_element_type=jnp.float32) + bq    # (S, H)

    wkvT = w_ref[WKVT_R:WKVT_R + 2 * H, 0:H]                        # (2H, H)
    bkvT = w_ref[BKVT_R:BKVT_R + 2 * H, 0:1]                        # (2H, 1)
    kvT = lax.dot_general(wkvT, x, (((1,), (1,)), ((), ())),
                          preferred_element_type=jnp.float32) + bkvT  # (2H, S)

    scale = 1.0 / (HEAD_DIM ** 0.5)
    attn_out = jnp.zeros((S, H), jnp.float32)
    for h in range(NUM_HEADS):                                      # static loop, 2 heads
        q_h = q[:, h * HEAD_DIM:(h + 1) * HEAD_DIM]                 # (S, D)
        kT_h = kvT[h * HEAD_DIM:(h + 1) * HEAD_DIM, :]              # (D, S) sublane slice
        vT_h = kvT[H + h * HEAD_DIM:H + (h + 1) * HEAD_DIM, :]      # (D, S) sublane slice

        scores = jnp.dot(q_h, kT_h, preferred_element_type=jnp.float32) * scale
        scores = scores + attn_bias                                 # mask keys
        scores = scores - jnp.max(scores, axis=-1, keepdims=True)
        p = jnp.exp(scores)
        p = p * pl.reciprocal(jnp.sum(p, axis=-1, keepdims=True), approx=True)

        ctx = lax.dot_general(p, vT_h, (((1,), (1,)), ((), ())),
                              preferred_element_type=jnp.float32)   # (S, D)
        # accumulate this head directly into the attention output (no scratch)
        wo_h = w_ref[WO_R + h * HEAD_DIM:WO_R + (h + 1) * HEAD_DIM, 0:H]
        attn_out = attn_out + jnp.dot(ctx, wo_h, preferred_element_type=jnp.float32)

    attn_out = attn_out + b_ref[BO_ROW:BO_ROW + 1, 0:H]
    h1 = _layer_norm(x + attn_out,
                     b_ref[LN1G_ROW:LN1G_ROW + 1, 0:H],
                     b_ref[LN1B_ROW:LN1B_ROW + 1, 0:H])

    # ---- feed-forward --------------------------------------------------------
    ff = jnp.dot(h1, w_ref[W1_R:W1_R + H, 0:FFN],
                 preferred_element_type=jnp.float32) + b_ref[B1_ROW:B1_ROW + 1, 0:FFN]
    # TODO(synk): real HF/PyTorch BERT uses erf-based gelu; tanh approximation kept here.
    ff = jax.nn.gelu(ff)
    ff = jnp.dot(ff, w_ref[W2_R:W2_R + FFN, 0:H],
                 preferred_element_type=jnp.float32) + b_ref[B2_ROW:B2_ROW + 1, 0:H]
    h2 = _layer_norm(h1 + ff,
                     b_ref[LN2G_ROW:LN2G_ROW + 1, 0:H],
                     b_ref[LN2B_ROW:LN2B_ROW + 1, 0:H])

    # ---- pooler + classifier on the CLS row only -----------------------------
    cls = h2[0:1, :]                                                # (1, H)
    pooled = jnp.tanh(jnp.dot(cls, w_ref[WP_R:WP_R + H, 0:H],
                              preferred_element_type=jnp.float32)
                      + b_ref[BP_ROW:BP_ROW + 1, 0:H])
    # dropout(p=dr_rate) -> identity at inference time
    logits = jnp.dot(pooled, w_ref[WC_R:WC_R + H, :],
                     preferred_element_type=jnp.float32) + b_ref[BC_ROW:BC_ROW + 1, :]
    out_ref[0, :, :] = logits                                       # (1, OUT_PAD) store


def make_params(key):
    def nrm(k, shape, scale=0.02):
        return (scale * jax.random.normal(k, shape)).astype(jnp.float32)

    ks = jax.random.split(key, 12)
    zeros = lambda n: jnp.zeros((n,), jnp.float32)
    return dict(
        word_emb=nrm(ks[0], (VOCAB, H)),
        seg_emb=nrm(ks[1], (TYPE_VOCAB, H)),
        pos_emb=nrm(ks[2], (S, H)),
        wq=nrm(ks[3], (H, H)), wk=nrm(ks[4], (H, H)), wv=nrm(ks[5], (H, H)),
        bq=zeros(H), bk=zeros(H), bv=zeros(H),
        wo=nrm(ks[6], (H, H)), bo=zeros(H),
        ln1g=jnp.ones((H,), jnp.float32), ln1b=zeros(H),
        w1=nrm(ks[7], (H, FFN)), b1=zeros(FFN),
        w2=nrm(ks[8], (FFN, H)), b2=zeros(H),
        ln2g=jnp.ones((H,), jnp.float32), ln2b=zeros(H),
        wp=nrm(ks[9], (H, H)), bp=zeros(H),
        wc=nrm(ks[10], (H, C)), bc=zeros(C),
    )


def _pack_operands(params):
    """Pack all weights/biases into two lane-dense f32 slabs (2 DMAs total)."""
    # NOTE: at real sizes (H=768) store these bf16-resident and cast at the dots.
    w = jnp.zeros((W_ROWS, 128), jnp.float32)
    w = w.at[WQ_R:WQ_R + H, 0:H].set(params["wq"])
    wkvT = jnp.concatenate([params["wk"].T, params["wv"].T], axis=0)       # (2H, H)
    w = w.at[WKVT_R:WKVT_R + 2 * H, 0:H].set(wkvT)
    bkvT = jnp.concatenate([params["bk"], params["bv"]], axis=0).reshape(2 * H, 1)
    w = w.at[BKVT_R:BKVT_R + 2 * H, 0:1].set(bkvT)
    w = w.at[WO_R:WO_R + H, 0:H].set(params["wo"])
    w = w.at[W1_R:W1_R + H, 0:FFN].set(params["w1"])
    w = w.at[W2_R:W2_R + FFN, 0:H].set(params["w2"])
    w = w.at[WP_R:WP_R + H, 0:H].set(params["wp"])
    w = w.at[WC_R:WC_R + H, 0:C].set(params["wc"])                          # lane-padded head

    bsl = jnp.zeros((B_ROWS, 128), jnp.float32)
    bsl = bsl.at[BQ_ROW, 0:H].set(params["bq"])
    bsl = bsl.at[BO_ROW, 0:H].set(params["bo"])
    bsl = bsl.at[LN1G_ROW, 0:H].set(params["ln1g"])
    bsl = bsl.at[LN1B_ROW, 0:H].set(params["ln1b"])
    bsl = bsl.at[B1_ROW, 0:FFN].set(params["b1"])
    bsl = bsl.at[B2_ROW, 0:H].set(params["b2"])
    bsl = bsl.at[LN2G_ROW, 0:H].set(params["ln2g"])
    bsl = bsl.at[LN2B_ROW, 0:H].set(params["ln2b"])
    bsl = bsl.at[BP_ROW, 0:H].set(params["bp"])
    bsl = bsl.at[BC_ROW, 0:C].set(params["bc"])
    return w, bsl


@jax.jit
def bert_classifier_forward(token_ids, valid_length, segment_ids, params):
    # glue (plain JAX): embedding gathers and operand packing
    x_emb = (
        jnp.take(params["word_emb"], token_ids, axis=0)
        + jnp.take(params["seg_emb"], segment_ids, axis=0)
        + params["pos_emb"][None, :, :]
    ).astype(jnp.float32)                                            # (B, S, H)

    w_slab, b_slab = _pack_operands(params)

    logits_pad = pl.pallas_call(
        bert_classifier_kernel,
        grid=(B,),
        out_shape=jax.ShapeDtypeStruct((B, 1, OUT_PAD), jnp.float32),
        in_specs=[
            pl.BlockSpec(memory_space=pltpu.MemorySpace.SMEM),        # valid_length (B,)
            pl.BlockSpec((1, S, H), lambda b: (b, 0, 0)),             # per-batch embeddings
            pl.BlockSpec((W_ROWS, 128), lambda b: (0, 0)),            # weight slab (resident)
            pl.BlockSpec((B_ROWS, 128), lambda b: (0, 0)),            # bias slab (resident)
        ],
        out_specs=pl.BlockSpec((1, 1, OUT_PAD), lambda b: (b, 0, 0)),
        compiler_params=pltpu.CompilerParams(
            dimension_semantics=("parallel",)),                       # 2 TCs on v7x
    )(valid_length.astype(jnp.int32), x_emb, w_slab, b_slab)

    return logits_pad[:, 0, :C]


if __name__ == "__main__":
    key = jax.random.PRNGKey(0)
    k_tok, k_param = jax.random.split(key)

    token_ids = jax.random.randint(k_tok, (B, S), 0, VOCAB, dtype=jnp.int32)
    valid_length = jnp.array([5, 8], dtype=jnp.int32)
    segment_ids = jnp.zeros((B, S), dtype=jnp.int32)
    assert int(valid_length.min()) >= 1, "valid_length must be >= 1 (CLS always valid)"

    params = make_params(k_param)

    logits = bert_classifier_forward(token_ids, valid_length, segment_ids, params)
    logits = jax.block_until_ready(logits)
    assert logits.shape == (B, C) and logits.dtype == jnp.float32
    assert bool(jnp.all(jnp.isfinite(logits)))
    print("KERNEL_OK")
</pallas_src>

<mosaic_0001>
module attributes {stable_mosaic.version = 11 : i64} {
  func.func @bert_classifier_kernel(%arg0: i32, %arg1: memref<2xi32, #tpu.memory_space<smem>>, %arg2: memref<1x8x32xf32, #tpu.memory_space<vmem>>, %arg3: memref<416x128xf32, #tpu.memory_space<vmem>>, %arg4: memref<16x128xf32, #tpu.memory_space<vmem>>, %arg5: memref<1x1x128xf32, #tpu.memory_space<vmem>>) attributes {dimension_semantics = [#tpu.dimension_semantics<parallel>], iteration_bounds = array<i64: 2>, scalar_prefetch = 0 : i64, scratch_operands = 0 : i64, tpu.core_type = #tpu.core_type<tc>, window_params = [{transform_indices = @transform_0, window_bounds = array<i64: 2>}, {transform_indices = @transform_1, window_bounds = array<i64: 1, 8, 32>}, {pipeline_mode = #tpu.pipeline_mode<synchronous>, transform_indices = @transform_2, window_bounds = array<i64: 416, 128>}, {pipeline_mode = #tpu.pipeline_mode<synchronous>, transform_indices = @transform_3, window_bounds = array<i64: 16, 128>}, {transform_indices = @transform_4, window_bounds = array<i64: 1, 1, 128>}]} {
    %c0 = arith.constant 0 : index
    %c0_0 = arith.constant 0 : index
    %c0_1 = arith.constant 0 : index
    %0 = vector.load %arg2[%c0, %c0_0, %c0_1] : memref<1x8x32xf32, #tpu.memory_space<vmem>>, vector<1x8x32xf32>
    %1 = vector.shape_cast %0 : vector<1x8x32xf32> to vector<8x32xf32>
    %2 = tpu.iota {dimensions = array<i32: 1>} : vector<1x8xi32>
    %3 = arith.index_cast %arg0 : i32 to index
    %4 = memref.load %arg1[%3] : memref<2xi32, #tpu.memory_space<smem>>
    %5 = vector.broadcast %4 : i32 to vector<1x8xi32>
    %6 = arith.cmpi slt, %2, %5 : vector<1x8xi32>
    %7 = arith.extui %6 : vector<1x8xi1> to vector<1x8xi32>
    %8 = arith.sitofp %7 : vector<1x8xi32> to vector<1x8xf32>
    %cst = arith.constant 1.000000e+00 : f32
    %9 = vector.broadcast %cst : f32 to vector<1x8xf32>
    %10 = arith.subf %8, %9 : vector<1x8xf32>
    %cst_2 = arith.constant 1.000000e+04 : f32
    %11 = vector.broadcast %cst_2 : f32 to vector<1x8xf32>
    %12 = arith.mulf %10, %11 : vector<1x8xf32>
    %c0_3 = arith.constant 0 : index
    %c0_4 = arith.constant 0 : index
    %13 = vector.load %arg3[%c0_3, %c0_4] : memref<416x128xf32, #tpu.memory_space<vmem>>, vector<32x32xf32>
    %c0_5 = arith.constant 0 : index
    %c0_6 = arith.constant 0 : index
    %14 = vector.load %arg4[%c0_5, %c0_6] : memref<16x128xf32, #tpu.memory_space<vmem>>, vector<1x32xf32>
    %cst_7 = arith.constant dense<0.000000e+00> : vector<8x32xf32>
    %15 = tpu.matmul %1, %13, %cst_7 {dimension_numbers = #tpu.dot_dimension_numbers<[1], [0], [0], [1], [0, 0, 1, 1], [], []>} : vector<8x32xf32>, vector<32x32xf32>, vector<8x32xf32> -> vector<8x32xf32>
    %16 = vector.broadcast %14 : vector<1x32xf32> to vector<8x32xf32>
    %17 = arith.addf %15, %16 : vector<8x32xf32>
    %c32 = arith.constant 32 : index
    %c0_8 = arith.constant 0 : index
    %18 = vector.load %arg3[%c32, %c0_8] : memref<416x128xf32, #tpu.memory_space<vmem>>, vector<64x32xf32>
    %c96 = arith.constant 96 : index
    %c0_9 = arith.constant 0 : index
    %19 = vector.load %arg3[%c96, %c0_9] : memref<416x128xf32, #tpu.memory_space<vmem>>, vector<64x1xf32>
    %cst_10 = arith.constant dense<0.000000e+00> : vector<64x8xf32>
    %20 = tpu.matmul %18, %1, %cst_10 {dimension_numbers = #tpu.dot_dimension_numbers<[1], [1], [0], [0], [0, 0, 1, 0], [], []>} : vector<64x32xf32>, vector<8x32xf32>, vector<64x8xf32> -> vector<64x8xf32>
    %21 = vector.broadcast %19 : vector<64x1xf32> to vector<64x8xf32>
    %22 = arith.addf %20, %21 : vector<64x8xf32>
    %cst_11 = arith.constant 0.000000e+00 : f32
    %23 = vector.broadcast %cst_11 : f32 to vector<8x32xf32>
    %24 = vector.extract_strided_slice %17 {offsets = [0, 0], sizes = [8, 16], strides = [1, 1]} : vector<8x32xf32> to vector<8x16xf32>
    %25 = vector.extract_strided_slice %22 {offsets = [0, 0], sizes = [16, 8], strides = [1, 1]} : vector<64x8xf32> to vector<16x8xf32>
    %26 = vector.extract_strided_slice %22 {offsets = [32, 0], sizes = [16, 8], strides = [1, 1]} : vector<64x8xf32> to vector<16x8xf32>
    %cst_12 = arith.constant dense<0.000000e+00> : vector<8x8xf32>
    %27 = tpu.matmul %24, %25, %cst_12 {dimension_numbers = #tpu.dot_dimension_numbers<[1], [0], [0], [1], [0, 0, 1, 1], [], []>} : vector<8x16xf32>, vector<16x8xf32>, vector<8x8xf32> -> vector<8x8xf32>
    %cst_13 = arith.constant 2.500000e-01 : f32
    %28 = vector.broadcast %cst_13 : f32 to vector<8x8xf32>
    %29 = arith.mulf %27, %28 : vector<8x8xf32>
    %30 = vector.broadcast %12 : vector<1x8xf32> to vector<8x8xf32>
    %31 = arith.addf %29, %30 : vector<8x8xf32>
    %cst_14 = arith.constant dense<0xFF800000> : vector<8xf32>
    %32 = vector.multi_reduction <maximumf>, %31, %cst_14 [1] : vector<8x8xf32> to vector<8xf32>
    %33 = vector.shape_cast %32 : vector<8xf32> to vector<8x1xf32>
    %34 = vector.broadcast %33 : vector<8x1xf32> to vector<8x8xf32>
    %35 = arith.subf %31, %34 : vector<8x8xf32>
    %36 = math.exp %35 : vector<8x8xf32>
    %cst_15 = arith.constant dense<0.000000e+00> : vector<8xf32>
    %37 = vector.multi_reduction <add>, %36, %cst_15 [1] : vector<8x8xf32> to vector<8xf32>
    %38 = vector.shape_cast %37 : vector<8xf32> to vector<8x1xf32>
    %39 = tpu.reciprocal %38 {approx = true} : vector<8x1xf32> -> vector<8x1xf32>
    %40 = vector.broadcast %39 : vector<8x1xf32> to vector<8x8xf32>
    %41 = arith.mulf %36, %40 : vector<8x8xf32>
    %cst_16 = arith.constant dense<0.000000e+00> : vector<8x16xf32>
    %42 = tpu.matmul %41, %26, %cst_16 {dimension_numbers = #tpu.dot_dimension_numbers<[1], [1], [0], [0], [0, 0, 1, 0], [], []>} : vector<8x8xf32>, vector<16x8xf32>, vector<8x16xf32> -> vector<8x16xf32>
    %c160 = arith.constant 160 : index
    %c0_17 = arith.constant 0 : index
    %43 = vector.load %arg3[%c160, %c0_17] : memref<416x128xf32, #tpu.memory_space<vmem>>, vector<16x32xf32>
    %cst_18 = arith.constant dense<0.000000e+00> : vector<8x32xf32>
    %44 = tpu.matmul %42, %43, %cst_18 {dimension_numbers = #tpu.dot_dimension_numbers<[1], [0], [0], [1], [0, 0, 1, 1], [], []>} : vector<8x16xf32>, vector<16x32xf32>, vector<8x32xf32> -> vector<8x32xf32>
    %45 = arith.addf %23, %44 : vector<8x32xf32>
    %46 = vector.extract_strided_slice %17 {offsets = [0, 16], sizes = [8, 16], strides = [1, 1]} : vector<8x32xf32> to vector<8x16xf32>
    %47 = vector.extract_strided_slice %22 {offsets = [16, 0], sizes = [16, 8], strides = [1, 1]} : vector<64x8xf32> to vector<16x8xf32>
    %48 = vector.extract_strided_slice %22 {offsets = [48, 0], sizes = [16, 8], strides = [1, 1]} : vector<64x8xf32> to vector<16x8xf32>
    %cst_19 = arith.constant dense<0.000000e+00> : vector<8x8xf32>
    %49 = tpu.matmul %46, %47, %cst_19 {dimension_numbers = #tpu.dot_dimension_numbers<[1], [0], [0], [1], [0, 0, 1, 1], [], []>} : vector<8x16xf32>, vector<16x8xf32>, vector<8x8xf32> -> vector<8x8xf32>
    %cst_20 = arith.constant 2.500000e-01 : f32
    %50 = vector.broadcast %cst_20 : f32 to vector<8x8xf32>
    %51 = arith.mulf %49, %50 : vector<8x8xf32>
    %52 = vector.broadcast %12 : vector<1x8xf32> to vector<8x8xf32>
    %53 = arith.addf %51, %52 : vector<8x8xf32>
    %cst_21 = arith.constant dense<0xFF800000> : vector<8xf32>
    %54 = vector.multi_reduction <maximumf>, %53, %cst_21 [1] : vector<8x8xf32> to vector<8xf32>
    %55 = vector.shape_cast %54 : vector<8xf32> to vector<8x1xf32>
    %56 = vector.broadcast %55 : vector<8x1xf32> to vector<8x8xf32>
    %57 = arith.subf %53, %56 : vector<8x8xf32>
    %58 = math.exp %57 : vector<8x8xf32>
    %cst_22 = arith.constant dense<0.000000e+00> : vector<8xf32>
    %59 = vector.multi_reduction <add>, %58, %cst_22 [1] : vector<8x8xf32> to vector<8xf32>
    %60 = vector.shape_cast %59 : vector<8xf32> to vector<8x1xf32>
    %61 = tpu.reciprocal %60 {approx = true} : vector<8x1xf32> -> vector<8x1xf32>
    %62 = vector.broadcast %61 : vector<8x1xf32> to vector<8x8xf32>
    %63 = arith.mulf %58, %62 : vector<8x8xf32>
    %cst_23 = arith.constant dense<0.000000e+00> : vector<8x16xf32>
    %64 = tpu.matmul %63, %48, %cst_23 {dimension_numbers = #tpu.dot_dimension_numbers<[1], [1], [0], [0], [0, 0, 1, 0], [], []>} : vector<8x8xf32>, vector<16x8xf32>, vector<8x16xf32> -> vector<8x16xf32>
    %c176 = arith.constant 176 : index
    %c0_24 = arith.constant 0 : index
    %65 = vector.load %arg3[%c176, %c0_24] : memref<416x128xf32, #tpu.memory_space<vmem>>, vector<16x32xf32>
    %cst_25 = arith.constant dense<0.000000e+00> : vector<8x32xf32>
    %66 = tpu.matmul %64, %65, %cst_25 {dimension_numbers = #tpu.dot_dimension_numbers<[1], [0], [0], [1], [0, 0, 1, 1], [], []>} : vector<8x16xf32>, vector<16x32xf32>, vector<8x32xf32> -> vector<8x32xf32>
    %67 = arith.addf %45, %66 : vector<8x32xf32>
    %c1 = arith.constant 1 : index
    %c0_26 = arith.constant 0 : index
    %68 = vector.load %arg4[%c1, %c0_26] : memref<16x128xf32, #tpu.memory_space<vmem>>, vector<1x32xf32>
    %69 = vector.broadcast %68 : vector<1x32xf32> to vector<8x32xf32>
    %70 = arith.addf %67, %69 : vector<8x32xf32>
    %71 = arith.addf %1, %70 : vector<8x32xf32>
    %c2 = arith.constant 2 : index
    %c0_27 = arith.constant 0 : index
    %72 = vector.load %arg4[%c2, %c0_27] : memref<16x128xf32, #tpu.memory_space<vmem>>, vector<1x32xf32>
    %c3 = arith.constant 3 : index
    %c0_28 = arith.constant 0 : index
    %73 = vector.load %arg4[%c3, %c0_28] : memref<16x128xf32, #tpu.memory_space<vmem>>, vector<1x32xf32>
    %cst_29 = arith.constant dense<0.000000e+00> : vector<8xf32>
    %74 = vector.multi_reduction <add>, %71, %cst_29 [1] : vector<8x32xf32> to vector<8xf32>
    %75 = vector.shape_cast %74 : vector<8xf32> to vector<8x1xf32>
    %cst_30 = arith.constant 3.200000e+01 : f32
    %76 = vector.broadcast %cst_30 : f32 to vector<8x1xf32>
    %77 = arith.divf %75, %76 : vector<8x1xf32>
    %78 = vector.broadcast %77 : vector<8x1xf32> to vector<8x32xf32>
    %79 = arith.subf %71, %78 : vector<8x32xf32>
    %80 = arith.mulf %79, %79 : vector<8x32xf32>
    %cst_31 = arith.constant dense<0.000000e+00> : vector<8xf32>
    %81 = vector.multi_reduction <add>, %80, %cst_31 [1] : vector<8x32xf32> to vector<8xf32>
    %82 = vector.shape_cast %81 : vector<8xf32> to vector<8x1xf32>
    %cst_32 = arith.constant 3.200000e+01 : f32
    %83 = vector.broadcast %cst_32 : f32 to vector<8x1xf32>
    %84 = arith.divf %82, %83 : vector<8x1xf32>
    %85 = vector.broadcast %77 : vector<8x1xf32> to vector<8x32xf32>
    %86 = arith.subf %71, %85 : vector<8x32xf32>
    %cst_33 = arith.constant 9.99999996E-13 : f32
    %87 = vector.broadcast %cst_33 : f32 to vector<8x1xf32>
    %88 = arith.addf %84, %87 : vector<8x1xf32>
    %89 = math.rsqrt %88 : vector<8x1xf32>
    %90 = vector.broadcast %89 : vector<8x1xf32> to vector<8x32xf32>
    %91 = arith.mulf %86, %90 : vector<8x32xf32>
    %92 = vector.broadcast %72 : vector<1x32xf32> to vector<8x32xf32>
    %93 = arith.mulf %91, %92 : vector<8x32xf32>
    %94 = vector.broadcast %73 : vector<1x32xf32> to vector<8x32xf32>
    %95 = arith.addf %93, %94 : vector<8x32xf32>
    %c192 = arith.constant 192 : index
    %c0_34 = arith.constant 0 : index
    %96 = vector.load %arg3[%c192, %c0_34] : memref<416x128xf32, #tpu.memory_space<vmem>>, vector<32x128xf32>
    %cst_35 = arith.constant dense<0.000000e+00> : vector<8x128xf32>
    %97 = tpu.matmul %95, %96, %cst_35 {dimension_numbers = #tpu.dot_dimension_numbers<[1], [0], [0], [1], [0, 0, 1, 1], [], []>} : vector<8x32xf32>, vector<32x128xf32>, vector<8x128xf32> -> vector<8x128xf32>
    %c4 = arith.constant 4 : index
    %c0_36 = arith.constant 0 : index
    %98 = vector.load %arg4[%c4, %c0_36] : memref<16x128xf32, #tpu.memory_space<vmem>>, vector<1x128xf32>
    %99 = vector.broadcast %98 : vector<1x128xf32> to vector<8x128xf32>
    %100 = arith.addf %97, %99 : vector<8x128xf32>
    %101 = arith.mulf %100, %100 : vector<8x128xf32>
    %102 = arith.mulf %100, %101 : vector<8x128xf32>
    %cst_37 = arith.constant 4.471500e-02 : f32
    %103 = vector.broadcast %cst_37 : f32 to vector<8x128xf32>
    %104 = arith.mulf %103, %102 : vector<8x128xf32>
    %105 = arith.addf %100, %104 : vector<8x128xf32>
    %cst_38 = arith.constant 0.797884583 : f32
    %106 = vector.broadcast %cst_38 : f32 to vector<8x128xf32>
    %107 = arith.mulf %106, %105 : vector<8x128xf32>
    %108 = math.tanh %107 : vector<8x128xf32>
    %cst_39 = arith.constant 1.000000e+00 : f32
    %109 = vector.broadcast %cst_39 : f32 to vector<8x128xf32>
    %110 = arith.addf %109, %108 : vector<8x128xf32>
    %cst_40 = arith.constant 5.000000e-01 : f32
    %111 = vector.broadcast %cst_40 : f32 to vector<8x128xf32>
    %112 = arith.mulf %111, %110 : vector<8x128xf32>
    %113 = arith.mulf %100, %112 : vector<8x128xf32>
    %c224 = arith.constant 224 : index
    %c0_41 = arith.constant 0 : index
    %114 = vector.load %arg3[%c224, %c0_41] : memref<416x128xf32, #tpu.memory_space<vmem>>, vector<128x32xf32>
    %cst_42 = arith.constant dense<0.000000e+00> : vector<8x32xf32>
    %115 = tpu.matmul %113, %114, %cst_42 {dimension_numbers = #tpu.dot_dimension_numbers<[1], [0], [0], [1], [0, 0, 1, 1], [], []>} : vector<8x128xf32>, vector<128x32xf32>, vector<8x32xf32> -> vector<8x32xf32>
    %c5 = arith.constant 5 : index
    %c0_43 = arith.constant 0 : index
    %116 = vector.load %arg4[%c5, %c0_43] : memref<16x128xf32, #tpu.memory_space<vmem>>, vector<1x32xf32>
    %117 = vector.broadcast %116 : vector<1x32xf32> to vector<8x32xf32>
    %118 = arith.addf %115, %117 : vector<8x32xf32>
    %119 = arith.addf %95, %118 : vector<8x32xf32>
    %c6 = arith.constant 6 : index
    %c0_44 = arith.constant 0 : index
    %120 = vector.load %arg4[%c6, %c0_44] : memref<16x128xf32, #tpu.memory_space<vmem>>, vector<1x32xf32>
    %c7 = arith.constant 7 : index
    %c0_45 = arith.constant 0 : index
    %121 = vector.load %arg4[%c7, %c0_45] : memref<16x128xf32, #tpu.memory_space<vmem>>, vector<1x32xf32>
    %cst_46 = arith.constant dense<0.000000e+00> : vector<8xf32>
    %122 = vector.multi_reduction <add>, %119, %cst_46 [1] : vector<8x32xf32> to vector<8xf32>
    %123 = vector.shape_cast %122 : vector<8xf32> to vector<8x1xf32>
    %cst_47 = arith.constant 3.200000e+01 : f32
    %124 = vector.broadcast %cst_47 : f32 to vector<8x1xf32>
    %125 = arith.divf %123, %124 : vector<8x1xf32>
    %126 = vector.broadcast %125 : vector<8x1xf32> to vector<8x32xf32>
    %127 = arith.subf %119, %126 : vector<8x32xf32>
    %128 = arith.mulf %127, %127 : vector<8x32xf32>
    %cst_48 = arith.constant dense<0.000000e+00> : vector<8xf32>
    %129 = vector.multi_reduction <add>, %128, %cst_48 [1] : vector<8x32xf32> to vector<8xf32>
    %130 = vector.shape_cast %129 : vector<8xf32> to vector<8x1xf32>
    %cst_49 = arith.constant 3.200000e+01 : f32
    %131 = vector.broadcast %cst_49 : f32 to vector<8x1xf32>
    %132 = arith.divf %130, %131 : vector<8x1xf32>
    %133 = vector.broadcast %125 : vector<8x1xf32> to vector<8x32xf32>
    %134 = arith.subf %119, %133 : vector<8x32xf32>
    %cst_50 = arith.constant 9.99999996E-13 : f32
    %135 = vector.broadcast %cst_50 : f32 to vector<8x1xf32>
    %136 = arith.addf %132, %135 : vector<8x1xf32>
    %137 = math.rsqrt %136 : vector<8x1xf32>
    %138 = vector.broadcast %137 : vector<8x1xf32> to vector<8x32xf32>
    %139 = arith.mulf %134, %138 : vector<8x32xf32>
    %140 = vector.broadcast %120 : vector<1x32xf32> to vector<8x32xf32>
    %141 = arith.mulf %139, %140 : vector<8x32xf32>
    %142 = vector.broadcast %121 : vector<1x32xf32> to vector<8x32xf32>
    %143 = arith.addf %141, %142 : vector<8x32xf32>
    %144 = vector.extract_strided_slice %143 {offsets = [0, 0], sizes = [1, 32], strides = [1, 1]} : vector<8x32xf32> to vector<1x32xf32>
    %c352 = arith.constant 352 : index
    %c0_51 = arith.constant 0 : index
    %145 = vector.load %arg3[%c352, %c0_51] : memref<416x128xf32, #tpu.memory_space<vmem>>, vector<32x32xf32>
    %cst_52 = arith.constant dense<0.000000e+00> : vector<1x32xf32>
    %146 = tpu.matmul %144, %145, %cst_52 {dimension_numbers = #tpu.dot_dimension_numbers<[1], [0], [0], [1], [0, 0, 1, 1], [], []>} : vector<1x32xf32>, vector<32x32xf32>, vector<1x32xf32> -> vector<1x32xf32>
    %c8 = arith.constant 8 : index
    %c0_53 = arith.constant 0 : index
    %147 = vector.load %arg4[%c8, %c0_53] : memref<16x128xf32, #tpu.memory_space<vmem>>, vector<1x32xf32>
    %148 = arith.addf %146, %147 : vector<1x32xf32>
    %149 = math.tanh %148 : vector<1x32xf32>
    %c384 = arith.constant 384 : index
    %c0_54 = arith.constant 0 : index
    %150 = vector.load %arg3[%c384, %c0_54] : memref<416x128xf32, #tpu.memory_space<vmem>>, vector<32x128xf32>
    %cst_55 = arith.constant dense<0.000000e+00> : vector<1x128xf32>
    %151 = tpu.matmul %149, %150, %cst_55 {dimension_numbers = #tpu.dot_dimension_numbers<[1], [0], [0], [1], [0, 0, 1, 1], [], []>} : vector<1x32xf32>, vector<32x128xf32>, vector<1x128xf32> -> vector<1x128xf32>
    %c9 = arith.constant 9 : index
    %c0_56 = arith.constant 0 : index
    %152 = vector.load %arg4[%c9, %c0_56] : memref<16x128xf32, #tpu.memory_space<vmem>>, vector<1x128xf32>
    %153 = arith.addf %151, %152 : vector<1x128xf32>
    %c0_57 = arith.constant 0 : index
    %c0_58 = arith.constant 0 : index
    %c0_59 = arith.constant 0 : index
    %154 = vector.load %arg5[%c0_57, %c0_58, %c0_59] : memref<1x1x128xf32, #tpu.memory_space<vmem>>, vector<1x1x128xf32>
    %155 = vector.shape_cast %154 : vector<1x1x128xf32> to vector<1x128xf32>
    %156 = vector.shape_cast %153 : vector<1x128xf32> to vector<1x1x128xf32>
    tpu.vector_store %arg5[%c0_57, %c0_58, %c0_59], %156 {strides = array<i32>} : memref<1x1x128xf32, #tpu.memory_space<vmem>>, vector<1x1x128xf32>,
    return
  }
  func.func @transform_0(%arg0: i32) -> i32 {
    %c0_i32 = arith.constant 0 : i32
    %c0_i32_0 = arith.constant 0 : i32
    return %c0_i32 : i32
  }
  func.func @transform_1(%arg0: i32) -> (i32, i32, i32) {
    %c0_i32 = arith.constant 0 : i32
    %c0_i32_0 = arith.constant 0 : i32
    %c0_i32_1 = arith.constant 0 : i32
    return %arg0, %c0_i32, %c0_i32_0 : i32, i32, i32
  }
  func.func @transform_2(%arg0: i32) -> (i32, i32) {
    %c0_i32 = arith.constant 0 : i32
    %c0_i32_0 = arith.constant 0 : i32
    %c0_i32_1 = arith.constant 0 : i32
    return %c0_i32, %c0_i32_0 : i32, i32
  }
  func.func @transform_3(%arg0: i32) -> (i32, i32) {
    %c0_i32 = arith.constant 0 : i32
    %c0_i32_0 = arith.constant 0 : i32
    %c0_i32_1 = arith.constant 0 : i32
    return %c0_i32, %c0_i32_0 : i32, i32
  }
  func.func @transform_4(%arg0: i32) -> (i32, i32, i32) {
    %c0_i32 = arith.constant 0 : i32
    %c0_i32_0 = arith.constant 0 : i32
    %c0_i32_1 = arith.constant 0 : i32
    return %arg0, %c0_i32, %c0_i32_0 : i32, i32, i32
  }
}

</mosaic_0001>

<llo_original>
// kernel: bert_classifier_forward.1
$region0: #{bert_classifier_forward.1}
  #allocation0 [shape = 'u32[]', space=smem, size = 0x4, offset = 0x4, fixed_abs, tag = 'smem constant byte address 0x4 - core index']
  #allocation1 [shape = 'u32[144,128]{1,0:T(1,128)}', space=vmem, size = 0x12000, scoped, tag = 'internal scratch']
  %s0 = inlined_call_operand.vmem [shape: s32[2], index: 0, kind: input, shape index: {}]
  %s1 = inlined_call_operand.vmem [shape: f32[2,8,32], index: 1, kind: input, shape index: {}]
  %s2 = inlined_call_operand.vmem [shape: f32[416,128], index: 2, kind: input, shape index: {}]
  %s3 = inlined_call_operand.vmem [shape: f32[16,128], index: 3, kind: input, shape index: {}]
  %s4 = inlined_call_operand.hbm [shape: f32[2,1,128], index: 4, kind: output, shape index: {}]
  %s5 = sld [smem:[#allocation0]]
  $region53: #{bert_classifier_forward.1} parent=0
    _
  %s7 = ssub.s32 1, %s5
  %s8 = scalar_select 0, %s7, %s5
  $region1: #{bert_classifier_forward.1} parent=0
    #allocation2 [shape = 'u8[512]{0}', space=smem, size = 0x200, scoped, tag = 'input window, operand 0, single buffered']
    #allocation3 [shape = 's32[2]{0}', space=sflag, size = 0x8, scoped, tag = 'scoped memory for bert_classifier_forward.1']
    #allocation4 [shape = 's32[2]{0}', space=sflag, size = 0x8, scoped, tag = 'scoped memory for bert_classifier_forward.1']
    #allocation5 [shape = 'u8[1024]{0}', space=vmem, size = 0x400, scoped, tag = 'output window, operand 0']
    %9 = vsyncpa [#allocation4], 0
    %10 = vsyncpa [#allocation3], 0
    %s11 = scalar_lea.sflag [#allocation3], 1
    %12 = vsyncpa %s11, 0
    loop: start=0, step=1, limit=4
    $region2: #{bert_classifier_forward.1} parent=1 // loop_pre_header
      _
    $region3: #{bert_classifier_forward.1} parent=1 // loop_header
      %s14 = sphi 0, %s18
      %p15 = scmp.ge.s32.totalorder %s14, 4
      %s22 = sphi 0, %s22
      %s24 = sphi 0, %s22
      %s25 = sphi 0, %s24
      %s39 = sphi 0, %s25
      %s45 = sphi 0, %s47
      %s48 = sphi 0, %s45
      %s49 = sphi 0, %s48
      %s65 = sphi 0, %s49
      %s69 = sphi 0, %s69
      %s71 = sphi 0, %s69
      %s72 = sphi 0, %s71
      %s86 = sphi 0, %s72
      %s90 = sphi 0, %s90
      %s92 = sphi 0, %s90
      %s93 = sphi 0, %s92
      %s107 = sphi 0, %s93
      %s113 = sphi 0, %s115
      %s116 = sphi 0, %s113
      %s117 = sphi 0, %s116
      %s133 = sphi 0, %s117
    $region4: #{bert_classifier_forward.1} parent=1 // loop_header_branch
      %17 = sbr.rel (%p15) target = $region8
    $region5: #{bert_classifier_forward.1} parent=1 // loop_body
      %s19 = ssub.s32 %s14, 1
      %s20 = ssub.s32 %s14, 2
      %s21 = sadd.s32 %s14, 1
      %s23 = sadd.s32 %s22, 1
      %p26 = scmp.eq.s32.totalorder %s14, 1
      %p27 = scmp.ne.s32.totalorder %s22, %s24
      %p28 = scmp.eq.s32.totalorder %s14, 0
      %p29 = por %p27, %p28
      %p30 = scmp.ne.s32.totalorder %s22, %s24
      %p31 = scmp.eq.s32.totalorder %s19, 1
      %p32 = por %p30, %p31
      %p33 = scmp.ne.s32.totalorder %s24, %s25
      %p34 = scmp.eq.s32.totalorder %s19, 0
      %p35 = por %p33, %p34
      %p36 = scmp.ne.s32.totalorder %s24, %s25
      %p37 = scmp.eq.s32.totalorder %s20, 1
      %p38 = por %p36, %p37
      %p40 = scmp.ne.s32.totalorder %s25, %s39
      %p41 = scmp.eq.s32.totalorder %s20, 0
      %p42 = por %p40, %p41
      %s43 = ssub.s32 %s14, %s21
      %p44 = scmp.eq.s32.totalorder %s43, 0
      %s46 = sadd.s32 %s45, 1
      %s47 = scalar_select %p44, %s45, %s46
      %p50 = pneg %p44
      %p51 = scmp.eq.s32.totalorder %s14, 1
      %p52 = por %p50, %p51
      %p53 = scmp.ne.s32.totalorder %s45, %s48
      %p54 = scmp.eq.s32.totalorder %s14, 0
      %p55 = por %p53, %p54
      %p56 = scmp.ne.s32.totalorder %s45, %s48
      %p57 = scmp.eq.s32.totalorder %s19, 1
      %p58 = por %p56, %p57
      %p59 = scmp.ne.s32.totalorder %s48, %s49
      %p60 = scmp.eq.s32.totalorder %s19, 0
      %p61 = por %p59, %p60
      %p62 = scmp.ne.s32.totalorder %s48, %s49
      %p63 = scmp.eq.s32.totalorder %s20, 1
      %p64 = por %p62, %p63
      %p66 = scmp.ne.s32.totalorder %s49, %s65
      %p67 = scmp.eq.s32.totalorder %s20, 0
      %p68 = por %p66, %p67
      %s70 = sadd.s32 %s69, 1
      %p73 = scmp.eq.s32.totalorder %s14, 1
      %p74 = scmp.ne.s32.totalorder %s69, %s71
      %p75 = scmp.eq.s32.totalorder %s14, 0
      %p76 = por %p74, %p75
      %p77 = scmp.ne.s32.totalorder %s69, %s71
      %p78 = scmp.eq.s32.totalorder %s19, 1
      %p79 = por %p77, %p78
      %p80 = scmp.ne.s32.totalorder %s71, %s72
      %p81 = scmp.eq.s32.totalorder %s19, 0
      %p82 = por %p80, %p81
      %p83 = scmp.ne.s32.totalorder %s71, %s72
      %p84 = scmp.eq.s32.totalorder %s20, 1
      %p85 = por %p83, %p84
      %p87 = scmp.ne.s32.totalorder %s72, %s86
      %p88 = scmp.eq.s32.totalorder %s20, 0
      %p89 = por %p87, %p88
      %s91 = sadd.s32 %s90, 1
      %p94 = scmp.eq.s32.totalorder %s14, 1
      %p95 = scmp.ne.s32.totalorder %s90, %s92
      %p96 = scmp.eq.s32.totalorder %s14, 0
      %p97 = por %p95, %p96
      %p98 = scmp.ne.s32.totalorder %s90, %s92
      %p99 = scmp.eq.s32.totalorder %s19, 1
      %p100 = por %p98, %p99
      %p101 = scmp.ne.s32.totalorder %s92, %s93
      %p102 = scmp.eq.s32.totalorder %s19, 0
      %p103 = por %p101, %p102
      %p104 = scmp.ne.s32.totalorder %s92, %s93
      %p105 = scmp.eq.s32.totalorder %s20, 1
      %p106 = por %p104, %p105
      %p108 = scmp.ne.s32.totalorder %s93, %s107
      %p109 = scmp.eq.s32.totalorder %s20, 0
      %p110 = por %p108, %p109
      %s111 = ssub.s32 %s14, %s21
      %p112 = scmp.eq.s32.totalorder %s111, 0
      %s114 = sadd.s32 %s113, 1
      %s115 = scalar_select %p112, %s113, %s114
      %p118 = pneg %p112
      %p119 = scmp.eq.s32.totalorder %s14, 1
      %p120 = por %p118, %p119
      %p121 = scmp.ne.s32.totalorder %s113, %s116
      %p122 = scmp.eq.s32.totalorder %s14, 0
      %p123 = por %p121, %p122
      %p124 = scmp.ne.s32.totalorder %s113, %s116
      %p125 = scmp.eq.s32.totalorder %s19, 1
      %p126 = por %p124, %p125
      %p127 = scmp.ne.s32.totalorder %s116, %s117
      %p128 = scmp.eq.s32.totalorder %s19, 0
      %p129 = por %p127, %p128
      %p130 = scmp.ne.s32.totalorder %s116, %s117
      %p131 = scmp.eq.s32.totalorder %s20, 1
      %p132 = por %p130, %p131
      %p134 = scmp.ne.s32.totalorder %s117, %s133
      %p135 = scmp.eq.s32.totalorder %s20, 0
      %p136 = por %p134, %p135
      %p137 = scmp.le.s32.totalorder 1, %s14
      %p138 = scmp.lt.s32.totalorder %s14, 3
      %p139 = pnand %p137, %p138
      %p140 = pneg %p139
      // Predicated region
      $region9: #{bert_classifier_forward.1} parent=5 // pred_check
        _
      $region10: #{bert_classifier_forward.1} parent=5 // pred_check_branch
        %142 = sbr.rel (%p139) target = $region12
      $region11: #{bert_classifier_forward.1} parent=5 // pred_region
        %s143 = ssub.s32 %s14, 1
        // Predicated region
        $region13: #{bert_classifier_forward.1} parent=11 // pred_check
          %p144 = pneg %p35
        $region14: #{bert_classifier_forward.1} parent=11 // pred_check_branch
          %146 = sbr.rel (%p144) target = $region16
        $region15: #{bert_classifier_forward.1} parent=11 // pred_region
          %s148 = ssub.s32 16, 16
          %149 = vsyncadd [#allocation4], %s148
          %s151 = sshll.u32 %s0, 4
          %s152 = int_to_ptr.vmem [resolvable:$true] %s151
          %154 = dma.vmem_to_smem %s152, 16, [#allocation2], [#allocation4]
        $region16: #{bert_classifier_forward.1} parent=11 // pred_fallthru
          _
        // Predicated region
        $region17: #{bert_classifier_forward.1} parent=11 // pred_check
          %p155 = pneg %p82
        $region18: #{bert_classifier_forward.1} parent=11 // pred_check_branch
          %157 = sbr.rel (%p155) target = $region20
        $region19: #{bert_classifier_forward.1} parent=11 // pred_region
          _
        $region20: #{bert_classifier_forward.1} parent=11 // pred_fallthru
          _
        // Predicated region
        $region21: #{bert_classifier_forward.1} parent=11 // pred_check
          %p158 = pneg %p103
        $region22: #{bert_classifier_forward.1} parent=11 // pred_check_branch
          %160 = sbr.rel (%p158) target = $region24
        $region23: #{bert_classifier_forward.1} parent=11 // pred_region
          _
        $region24: #{bert_classifier_forward.1} parent=11 // pred_fallthru
          _
      $region12: #{bert_classifier_forward.1} parent=5 // pred_fallthru
        _
      %p161 = scmp.lt.s32.totalorder %s14, 2
      // Predicated region
      $region25: #{bert_classifier_forward.1} parent=5 // pred_check
        %p162 = pneg %p161
      $region26: #{bert_classifier_forward.1} parent=5 // pred_check_branch
        %164 = sbr.rel (%p162) target = $region28
      $region27: #{bert_classifier_forward.1} parent=5 // pred_region
        // Predicated region
        $region29: #{bert_classifier_forward.1} parent=27 // pred_check
          %p165 = pneg %p55
        $region30: #{bert_classifier_forward.1} parent=27 // pred_check_branch
          %167 = sbr.rel (%p165) target = $region32
        $region31: #{bert_classifier_forward.1} parent=27 // pred_region
          %p168 = scmp.lt.s32.totalorder %s14, 1
          %s169 = scalar_select %p168, %s14, 1
          %s170 = smul.addr %s169, 8
          %s171 = scalar_lea.vmem %s1, %s170
        $region32: #{bert_classifier_forward.1} parent=27 // pred_fallthru
          _
      $region28: #{bert_classifier_forward.1} parent=5 // pred_fallthru
        _
      %p172 = scmp.le.s32.totalorder 1, %s14
      %p173 = scmp.lt.s32.totalorder %s14, 3
      %p174 = pnand %p172, %p173
      %p175 = pneg %p174
      // Predicated region
      $region33: #{bert_classifier_forward.1} parent=5 // pred_check
        _
      $region34: #{bert_classifier_forward.1} parent=5 // pred_check_branch
        %177 = sbr.rel (%p174) target = $region36
      $region35: #{bert_classifier_forward.1} parent=5 // pred_region
        %s178 = ssub.s32 %s14, 1
        // Predicated region
        $region37: #{bert_classifier_forward.1} parent=35 // pred_check
          %p179 = pneg %p35
        $region38: #{bert_classifier_forward.1} parent=35 // pred_check_branch
          %181 = sbr.rel (%p179) target = $region40
        $region39: #{bert_classifier_forward.1} parent=35 // pred_region
          %182 = dma.done [#allocation4], 16
        $region40: #{bert_classifier_forward.1} parent=35 // pred_fallthru
          _
        %183 = sfence
        %p184 = pneg %p35
        %p185 = pneg %p32
        %p186 = scmp.lt.s32.totalorder %s19, 1
        %s187 = scalar_select %p186, %s19, 1
        %s188 = smul.addr %s187, 8
        %s189 = scalar_lea.vmem %s1, %s188
        %p190 = pneg %p61
        %p191 = pneg %p58
        %p192 = pneg %p82
        %p193 = pneg %p79
        %p194 = pneg %p103
        %p195 = pneg %p100
        %p196 = pneg %p129
        %p197 = pneg %p126
        %s198 = sand.u32 %s116, 1
        %s199 = scalar_lea.sflag [#allocation3], %s198
        %s200 = sand.u32 %s116, 1
        %s201 = scalar_lea.vmem [#allocation5], %s200
        %p202 = scmp.lt.s32.totalorder %s19, 1
        %s203 = scalar_select %p202, %s19, 1
        %s204 = smul.addr %s203, 8
        %s205 = scalar_lea.vmem %s1, %s204
        %v206 = vld [vmem:[%s205] sm:$0xff]
        %v207 = vlaneseq
        %v208 = vand.u32 %v207, 127
        %s209 = sld [smem:[#allocation2 + %s19]]
        %v210 = vstv %s209
        %vm211 = vcmp.lt.s32.totalorder %v208, %v210
        %v212 = vsel %vm211, 1, 0
        %v213 = vcvt.s32.f32 %v212
        %v214 = vsub.f32 %v213, 1.0
        %v215 = vmul.f32 %v214, 10000.0
        %v216 = vld [vmem:[%s2] sm:$0xff]
        %v217 = vld [vmem:[%s2 + $0x8] sm:$0xff]
        %v218 = vld [vmem:[%s2 + $0x10] sm:$0xff]
        %v219 = vld [vmem:[%s2 + $0x18] sm:$0xff]
        %v220 = vld [vmem:[%s3] sm:$0x1]
        %v221 = vlaneseq
        %v222 = vshrl.u32 %v221, 7
        %v223 = vsub.s32 0, %v222
        %v224 = vrot.slane %v220, %v223
        %vm225 = vcmask 261120
        %v227 = vsel %vm225, %v206, 0
        %229 = vmatprep.subr.mxu0 0.0
        %230 = vmatpush1.msra.mxu0 %v216
        %231 = vmatprep.subr.mxu0 0.0
        %232 = vmatpush1.msra.mxu0 %v217
        %233 = vmatprep.subr.mxu0 0.0
        %234 = vmatpush1.msra.mxu0 %v218
        %235 = vmatprep.subr.mxu0 0.0
        %236 = vmatpush1.msra.mxu0 %v219
        %237 = vmatprep.subr.mxu0 0.0
        %238 = vmatpush1.msra.mxu0 0.0
        %239 = vmatprep.subr.mxu0 0.0
        %240 = vmatpush1.msra.mxu0 0.0
        %241 = vmatprep.subr.mxu0 0.0
        %242 = vmatpush1.msra.mxu0 0.0
        %243 = vmatprep.subr.mxu0 0.0
        %244 = vmatpush1.msra.mxu0 0.0
        %245 = vmatprep.subr.mxu0 0.0
        %246 = vmatpush1.msra.mxu0 0.0
        %247 = vmatprep.subr.mxu0 0.0
        %248 = vmatpush1.msra.mxu0 0.0
        %249 = vmatprep.subr.mxu0 0.0
        %250 = vmatpush1.msra.mxu0 0.0
        %251 = vmatprep.subr.mxu0 0.0
        %252 = vmatpush1.msra.mxu0 0.0
        %253 = vmatprep.subr.mxu0 0.0
        %254 = vmatpush1.msra.mxu0 0.0
        %255 = vmatprep.subr.mxu0 0.0
        %256 = vmatpush1.msra.mxu0 0.0
        %257 = vmatprep.subr.mxu0 0.0
        %258 = vmatpush1.msra.mxu0 0.0
        %259 = vmatprep.subr.mxu0 0.0
        %260 = vmatpush1.msra.mxu0 0.0
        %261 = vmatprep.subr.mxu0 0.0
        %262 = vmatpush1.msra.mxu0 0.0
        %263 = vmatprep.subr.mxu0 0.0
        %264 = vmatpush1.msra.mxu0 0.0
        %265 = vmatprep.subr.mxu0 0.0
        %266 = vmatpush1.msra.mxu0 0.0
        %267 = vmatprep.subr.mxu0 0.0
        %268 = vmatpush1.msra.mxu0 0.0
        %269 = vmatprep.subr.mxu0 0.0
        %270 = vmatpush1.msra.mxu0 0.0
        %271 = vmatprep.subr.mxu0 0.0
        %272 = vmatpush1.msra.mxu0 0.0
        %273 = vmatprep.subr.mxu0 0.0
        %274 = vmatpush1.msra.mxu0 0.0
        %275 = vmatprep.subr.mxu0 0.0
        %276 = vmatpush1.msra.mxu0 0.0
        %277 = vmatprep.subr.mxu0 0.0
        %278 = vmatpush1.msra.mxu0 0.0
        %279 = vmatprep.subr.mxu0 0.0
        %280 = vmatpush1.msra.mxu0 0.0
        %281 = vmatprep.subr.mxu0 0.0
        %282 = vmatpush1.msra.mxu0 0.0
        %283 = vmatprep.subr.mxu0 0.0
        %284 = vmatpush1.msra.mxu0 0.0
        %285 = vmatprep.subr.mxu0 0.0
        %286 = vmatpush1.msra.mxu0 0.0
        %287 = vmatprep.subr.mxu0 0.0
        %288 = vmatpush1.msra.mxu0 0.0
        %289 = vmatprep.subr.mxu0 0.0
        %290 = vmatpush1.msra.mxu0 0.0
        %291 = vmatprep.subr.mxu0 0.0
        %292 = vmatpush1.msra.mxu0 0.0
        %293 = vmatprep.mubr.f32.mxu0 0.0
        %294 = vmatmul.mubr.f32.gmra.mrb[0].mxu0 %v227
        %v295 = vpop.f32.mrb[0].mxu0
        %v296 = vadd.f32 %v224, %v295
        %v297 = vpop.f32.mrb[0].mxu0
        %298 = vdwg.mxu0
        %v299 = vld [vmem:[%s2 + $0x20] sm:$0xff]
        %v300 = vld [vmem:[%s2 + $0x28] sm:$0xff]
        %v301 = vld [vmem:[%s2 + $0x30] sm:$0xff]
        %v302 = vld [vmem:[%s2 + $0x38] sm:$0xff]
        %v303 = vld [vmem:[%s2 + $0x40] sm:$0xff]
        %v304 = vld [vmem:[%s2 + $0x48] sm:$0xff]
        %v305 = vld [vmem:[%s2 + $0x50] sm:$0xff]
        %v306 = vld [vmem:[%s2 + $0x58] sm:$0xff]
        %v307 = vld [vmem:[%s2 + $0x60] sm:$0xff]
        %v308 = vld [vmem:[%s2 + $0x68] sm:$0xff]
        %v309 = vld [vmem:[%s2 + $0x70] sm:$0xff]
        %v310 = vld [vmem:[%s2 + $0x78] sm:$0xff]
        %v311 = vld [vmem:[%s2 + $0x80] sm:$0xff]
        %v312 = vld [vmem:[%s2 + $0x88] sm:$0xff]
        %v313 = vld [vmem:[%s2 + $0x90] sm:$0xff]
        %v314 = vld [vmem:[%s2 + $0x98] sm:$0xff]
        %316 = vset.pattern.permute.xlu0 0
        %317 = vperm.xlu0 %316, %v307
        %v318 = vpop.permute.xlu0 %317
        %321 = vset.pattern.permute.xlu0 0
        %322 = vperm.xlu0 %321, %v308
        %v323 = vpop.permute.xlu0 %322
        %326 = vset.pattern.permute.xlu0 0
        %327 = vperm.xlu0 %326, %v309
        %v328 = vpop.permute.xlu0 %327
        %331 = vset.pattern.permute.xlu0 0
        %332 = vperm.xlu0 %331, %v310
        %v333 = vpop.permute.xlu0 %332
        %336 = vset.pattern.permute.xlu0 0
        %337 = vperm.xlu0 %336, %v311
        %v338 = vpop.permute.xlu0 %337
        %341 = vset.pattern.permute.xlu0 0
        %342 = vperm.xlu0 %341, %v312
        %v343 = vpop.permute.xlu0 %342
        %346 = vset.pattern.permute.xlu0 0
        %347 = vperm.xlu0 %346, %v313
        %v348 = vpop.permute.xlu0 %347
        %351 = vset.pattern.permute.xlu0 0
        %352 = vperm.xlu0 %351, %v314
        %v353 = vpop.permute.xlu0 %352
        %v356 = vsel %vm225, %v299, 0
        %v359 = vsel %vm225, %v300, 0
        %v362 = vsel %vm225, %v301, 0
        %v365 = vsel %vm225, %v302, 0
        %v368 = vsel %vm225, %v303, 0
        %v371 = vsel %vm225, %v304, 0
        %v374 = vsel %vm225, %v305, 0
        %v377 = vsel %vm225, %v306, 0
        %379 = vmatprep.subr.mxu0 0.0
        %380 = vmatpush1.xpose.msra.mxu0 %v227
        %381 = vmatprep.subr.mxu0 0.0
        %382 = vmatpush1.xpose.msra.mxu0 0.0
        %383 = vmatprep.subr.mxu0 0.0
        %384 = vmatpush1.xpose.msra.mxu0 0.0
        %385 = vmatprep.subr.mxu0 0.0
        %386 = vmatpush1.xpose.msra.mxu0 0.0
        %387 = vmatprep.subr.mxu0 0.0
        %388 = vmatpush1.xpose.msra.mxu0 0.0
        %389 = vmatprep.subr.mxu0 0.0
        %390 = vmatpush1.xpose.msra.mxu0 0.0
        %391 = vmatprep.subr.mxu0 0.0
        %392 = vmatpush1.xpose.msra.mxu0 0.0
        %393 = vmatprep.subr.mxu0 0.0
        %394 = vmatpush1.xpose.msra.mxu0 0.0
        %395 = vmatprep.subr.mxu0 0.0
        %396 = vmatpush1.xpose.msra.mxu0 0.0
        %397 = vmatprep.subr.mxu0 0.0
        %398 = vmatpush1.xpose.msra.mxu0 0.0
        %399 = vmatprep.subr.mxu0 0.0
        %400 = vmatpush1.xpose.msra.mxu0 0.0
        %401 = vmatprep.subr.mxu0 0.0
        %402 = vmatpush1.xpose.msra.mxu0 0.0
        %403 = vmatprep.subr.mxu0 0.0
        %404 = vmatpush1.xpose.msra.mxu0 0.0
        %405 = vmatprep.subr.mxu0 0.0
        %406 = vmatpush1.xpose.msra.mxu0 0.0
        %407 = vmatprep.subr.mxu0 0.0
        %408 = vmatpush1.xpose.msra.mxu0 0.0
        %409 = vmatprep.subr.mxu0 0.0
        %410 = vmatpush1.xpose.msra.mxu0 0.0
        %411 = vmatprep.subr.mxu0 0.0
        %412 = vmatpush1.xpose.msra.mxu0 0.0
        %413 = vmatprep.subr.mxu0 0.0
        %414 = vmatpush1.xpose.msra.mxu0 0.0
        %415 = vmatprep.subr.mxu0 0.0
        %416 = vmatpush1.xpose.msra.mxu0 0.0
        %417 = vmatprep.subr.mxu0 0.0
        %418 = vmatpush1.xpose.msra.mxu0 0.0
        %419 = vmatprep.subr.mxu0 0.0
        %420 = vmatpush1.xpose.msra.mxu0 0.0
        %421 = vmatprep.subr.mxu0 0.0
        %422 = vmatpush1.xpose.msra.mxu0 0.0
        %423 = vmatprep.subr.mxu0 0.0
        %424 = vmatpush1.xpose.msra.mxu0 0.0
        %425 = vmatprep.subr.mxu0 0.0
        %426 = vmatpush1.xpose.msra.mxu0 0.0
        %427 = vmatprep.subr.mxu0 0.0
        %428 = vmatpush1.xpose.msra.mxu0 0.0
        %429 = vmatprep.subr.mxu0 0.0
        %430 = vmatpush1.xpose.msra.mxu0 0.0
        %431 = vmatprep.subr.mxu0 0.0
        %432 = vmatpush1.xpose.msra.mxu0 0.0
        %433 = vmatprep.subr.mxu0 0.0
        %434 = vmatpush1.xpose.msra.mxu0 0.0
        %435 = vmatprep.subr.mxu0 0.0
        %436 = vmatpush1.xpose.msra.mxu0 0.0
        %437 = vmatprep.subr.mxu0 0.0
        %438 = vmatpush1.xpose.msra.mxu0 0.0
        %439 = vmatprep.subr.mxu0 0.0
        %440 = vmatpush1.xpose.msra.mxu0 0.0
        %441 = vmatprep.subr.mxu0 0.0
        %442 = vmatpush1.xpose.msra.mxu0 0.0
        %443 = vmatprep.mubr.f32.mxu0 0.0
        %444 = vmatmul.mubr.f32.gmra.mrb[0].mxu0 %v356
        %v445 = vpop.f32.mrb[0].mxu0
        %v446 = vadd.f32 %v318, %v445
        %v447 = vpop.f32.mrb[0].mxu0
        %448 = vmatprep.mubr.f32.mxu0 0.0
        %449 = vmatmul.mubr.f32.gmra.mrb[0].mxu0 %v359
        %v450 = vpop.f32.mrb[0].mxu0
        %v451 = vadd.f32 %v323, %v450
        %v452 = vpop.f32.mrb[0].mxu0
        %453 = vmatprep.mubr.f32.mxu0 0.0
        %454 = vmatmul.mubr.f32.gmra.mrb[0].mxu0 %v362
        %v455 = vpop.f32.mrb[0].mxu0
        %v456 = vadd.f32 %v328, %v455
        %v457 = vpop.f32.mrb[0].mxu0
        %458 = vmatprep.mubr.f32.mxu0 0.0
        %459 = vmatmul.mubr.f32.gmra.mrb[0].mxu0 %v365
        %v460 = vpop.f32.mrb[0].mxu0
        %v461 = vadd.f32 %v333, %v460
        %v462 = vpop.f32.mrb[0].mxu0
        %463 = vmatprep.mubr.f32.mxu0 0.0
        %464 = vmatmul.mubr.f32.gmra.mrb[0].mxu0 %v368
        %v465 = vpop.f32.mrb[0].mxu0
        %v466 = vadd.f32 %v338, %v465
        %v467 = vpop.f32.mrb[0].mxu0
        %468 = vmatprep.mubr.f32.mxu0 0.0
        %469 = vmatmul.mubr.f32.gmra.mrb[0].mxu0 %v371
        %v470 = vpop.f32.mrb[0].mxu0
        %v471 = vadd.f32 %v343, %v470
        %v472 = vpop.f32.mrb[0].mxu0
        %473 = vmatprep.mubr.f32.mxu0 0.0
        %474 = vmatmul.mubr.f32.gmra.mrb[0].mxu0 %v374
        %v475 = vpop.f32.mrb[0].mxu0
        %v476 = vadd.f32 %v348, %v475
        %v477 = vpop.f32.mrb[0].mxu0
        %478 = vmatprep.mubr.f32.mxu0 0.0
        %479 = vmatmul.mubr.f32.gmra.mrb[0].mxu0 %v377
        %v480 = vpop.f32.mrb[0].mxu0
        %v481 = vadd.f32 %v353, %v480
        %v482 = vpop.f32.mrb[0].mxu0
        %483 = vdwg.mxu0
        %vm484 = vcmask 130048
        %v486 = vsel %vm484, %v296, 0
        %488 = vmatprep.subr.mxu0 0.0
        %489 = vmatpush1.msra.mxu0 %v446
        %490 = vmatprep.subr.mxu0 0.0
        %491 = vmatpush1.msra.mxu0 %v451
        %492 = vmatprep.subr.mxu0 0.0
        %493 = vmatpush1.msra.mxu0 0.0
        %494 = vmatprep.subr.mxu0 0.0
        %495 = vmatpush1.msra.mxu0 0.0
        %496 = vmatprep.subr.mxu0 0.0
        %497 = vmatpush1.msra.mxu0 0.0
        %498 = vmatprep.subr.mxu0 0.0
        %499 = vmatpush1.msra.mxu0 0.0
        %500 = vmatprep.subr.mxu0 0.0
        %501 = vmatpush1.msra.mxu0 0.0
        %502 = vmatprep.subr.mxu0 0.0
        %503 = vmatpush1.msra.mxu0 0.0
        %504 = vmatprep.subr.mxu0 0.0
        %505 = vmatpush1.msra.mxu0 0.0
        %506 = vmatprep.subr.mxu0 0.0
        %507 = vmatpush1.msra.mxu0 0.0
        %508 = vmatprep.subr.mxu0 0.0
        %509 = vmatpush1.msra.mxu0 0.0
        %510 = vmatprep.subr.mxu0 0.0
        %511 = vmatpush1.msra.mxu0 0.0
        %512 = vmatprep.subr.mxu0 0.0
        %513 = vmatpush1.msra.mxu0 0.0
        %514 = vmatprep.subr.mxu0 0.0
        %515 = vmatpush1.msra.mxu0 0.0
        %516 = vmatprep.subr.mxu0 0.0
        %517 = vmatpush1.msra.mxu0 0.0
        %518 = vmatprep.subr.mxu0 0.0
        %519 = vmatpush1.msra.mxu0 0.0
        %520 = vmatprep.subr.mxu0 0.0
        %521 = vmatpush1.msra.mxu0 0.0
        %522 = vmatprep.subr.mxu0 0.0
        %523 = vmatpush1.msra.mxu0 0.0
        %524 = vmatprep.subr.mxu0 0.0
        %525 = vmatpush1.msra.mxu0 0.0
        %526 = vmatprep.subr.mxu0 0.0
        %527 = vmatpush1.msra.mxu0 0.0
        %528 = vmatprep.subr.mxu0 0.0
        %529 = vmatpush1.msra.mxu0 0.0
        %530 = vmatprep.subr.mxu0 0.0
        %531 = vmatpush1.msra.mxu0 0.0
        %532 = vmatprep.subr.mxu0 0.0
        %533 = vmatpush1.msra.mxu0 0.0
        %534 = vmatprep.subr.mxu0 0.0
        %535 = vmatpush1.msra.mxu0 0.0
        %536 = vmatprep.subr.mxu0 0.0
        %537 = vmatpush1.msra.mxu0 0.0
        %538 = vmatprep.subr.mxu0 0.0
        %539 = vmatpush1.msra.mxu0 0.0
        %540 = vmatprep.subr.mxu0 0.0
        %541 = vmatpush1.msra.mxu0 0.0
        %542 = vmatprep.subr.mxu0 0.0
        %543 = vmatpush1.msra.mxu0 0.0
        %544 = vmatprep.subr.mxu0 0.0
        %545 = vmatpush1.msra.mxu0 0.0
        %546 = vmatprep.subr.mxu0 0.0
        %547 = vmatpush1.msra.mxu0 0.0
        %548 = vmatprep.subr.mxu0 0.0
        %549 = vmatpush1.msra.mxu0 0.0
        %550 = vmatprep.subr.mxu0 0.0
        %551 = vmatpush1.msra.mxu0 0.0
        %552 = vmatprep.mubr.f32.mxu0 0.0
        %553 = vmatmul.mubr.f32.gmra.mrb[0].mxu0 %v486
        %v554 = vpop.f32.mrb[0].mxu0
        %v555 = vadd.f32 0.0, %v554
        %v556 = vpop.f32.mrb[0].mxu0
        %557 = vdwg.mxu0
        %v558 = vmul.f32 %v555, 0.25
        %v559 = vadd.f32 %v558, %v215
        %vm560 = vcmask 64512
        %v561 = vsel %vm560, %v559, -inf
        %562 = vmax.xlane.f32.xlu0 %v561
        %v563 = vpop.xlane.xlu0 %562
        %v564 = vsub.f32 %v559, %v563
        %v565 = vmul.f32 %v564, 1.442695
        %v566 = vpow.pop %v565
        %v567 = vsel %vm560, %v566, 0.0
        %568 = vadd.xlane.f32.xlu0 %v567
        %v569 = vpop.xlane.xlu0 %568
        %v570 = vrcp.pop %v569
        %v571 = vmul.f32 %v566, %v570
        %v573 = vsel %vm560, %v571, 0
        %v576 = vsel %vm560, %v466, 0
        %v579 = vsel %vm560, %v471, 0
        %581 = vmatprep.subr.mxu0 0.0
        %582 = vmatpush1.xpose.msra.mxu0 %v576
        %583 = vmatprep.subr.mxu0 0.0
        %584 = vmatpush1.xpose.msra.mxu0 %v579
        %585 = vmatprep.subr.mxu0 0.0
        %586 = vmatpush1.xpose.msra.mxu0 0.0
        %587 = vmatprep.subr.mxu0 0.0
        %588 = vmatpush1.xpose.msra.mxu0 0.0
        %589 = vmatprep.subr.mxu0 0.0
        %590 = vmatpush1.xpose.msra.mxu0 0.0
        %591 = vmatprep.subr.mxu0 0.0
        %592 = vmatpush1.xpose.msra.mxu0 0.0
        %593 = vmatprep.subr.mxu0 0.0
        %594 = vmatpush1.xpose.msra.mxu0 0.0
        %595 = vmatprep.subr.mxu0 0.0
        %596 = vmatpush1.xpose.msra.mxu0 0.0
        %597 = vmatprep.subr.mxu0 0.0
        %598 = vmatpush1.xpose.msra.mxu0 0.0
        %599 = vmatprep.subr.mxu0 0.0
        %600 = vmatpush1.xpose.msra.mxu0 0.0
        %601 = vmatprep.subr.mxu0 0.0
        %602 = vmatpush1.xpose.msra.mxu0 0.0
        %603 = vmatprep.subr.mxu0 0.0
        %604 = vmatpush1.xpose.msra.mxu0 0.0
        %605 = vmatprep.subr.mxu0 0.0
        %606 = vmatpush1.xpose.msra.mxu0 0.0
        %607 = vmatprep.subr.mxu0 0.0
        %608 = vmatpush1.xpose.msra.mxu0 0.0
        %609 = vmatprep.subr.mxu0 0.0
        %610 = vmatpush1.xpose.msra.mxu0 0.0
        %611 = vmatprep.subr.mxu0 0.0
        %612 = vmatpush1.xpose.msra.mxu0 0.0
        %613 = vmatprep.subr.mxu0 0.0
        %614 = vmatpush1.xpose.msra.mxu0 0.0
        %615 = vmatprep.subr.mxu0 0.0
        %616 = vmatpush1.xpose.msra.mxu0 0.0
        %617 = vmatprep.subr.mxu0 0.0
        %618 = vmatpush1.xpose.msra.mxu0 0.0
        %619 = vmatprep.subr.mxu0 0.0
        %620 = vmatpush1.xpose.msra.mxu0 0.0
        %621 = vmatprep.subr.mxu0 0.0
        %622 = vmatpush1.xpose.msra.mxu0 0.0
        %623 = vmatprep.subr.mxu0 0.0
        %624 = vmatpush1.xpose.msra.mxu0 0.0
        %625 = vmatprep.subr.mxu0 0.0
        %626 = vmatpush1.xpose.msra.mxu0 0.0
        %627 = vmatprep.subr.mxu0 0.0
        %628 = vmatpush1.xpose.msra.mxu0 0.0
        %629 = vmatprep.subr.mxu0 0.0
        %630 = vmatpush1.xpose.msra.mxu0 0.0
        %631 = vmatprep.subr.mxu0 0.0
        %632 = vmatpush1.xpose.msra.mxu0 0.0
        %633 = vmatprep.subr.mxu0 0.0
        %634 = vmatpush1.xpose.msra.mxu0 0.0
        %635 = vmatprep.subr.mxu0 0.0
        %636 = vmatpush1.xpose.msra.mxu0 0.0
        %637 = vmatprep.subr.mxu0 0.0
        %638 = vmatpush1.xpose.msra.mxu0 0.0
        %639 = vmatprep.subr.mxu0 0.0
        %640 = vmatpush1.xpose.msra.mxu0 0.0
        %641 = vmatprep.subr.mxu0 0.0
        %642 = vmatpush1.xpose.msra.mxu0 0.0
        %643 = vmatprep.subr.mxu0 0.0
        %644 = vmatpush1.xpose.msra.mxu0 0.0
        %645 = vmatprep.mubr.f32.mxu0 0.0
        %646 = vmatmul.mubr.f32.gmra.mrb[0].mxu0 %v573
        %v647 = vpop.f32.mrb[0].mxu0
        %v648 = vadd.f32 0.0, %v647
        %v649 = vpop.f32.mrb[0].mxu0
        %650 = vdwg.mxu0
        %v651 = vld [vmem:[%s2 + $0xa0] sm:$0xff]
        %v652 = vld [vmem:[%s2 + $0xa8] sm:$0xff]
        %653 = vrot.lane.b32.xlu0 %v296, 112
        %v654 = vpop.permute.xlu0 %653
        %v655 = vsel %vm484, %v654, 0
        %657 = vmatprep.subr.mxu0 0.0
        %658 = vmatpush1.msra.mxu0 %v456
        %659 = vmatprep.subr.mxu0 0.0
        %660 = vmatpush1.msra.mxu0 %v461
        %661 = vmatprep.subr.mxu0 0.0
        %662 = vmatpush1.msra.mxu0 0.0
        %663 = vmatprep.subr.mxu0 0.0
        %664 = vmatpush1.msra.mxu0 0.0
        %665 = vmatprep.subr.mxu0 0.0
        %666 = vmatpush1.msra.mxu0 0.0
        %667 = vmatprep.subr.mxu0 0.0
        %668 = vmatpush1.msra.mxu0 0.0
        %669 = vmatprep.subr.mxu0 0.0
        %670 = vmatpush1.msra.mxu0 0.0
        %671 = vmatprep.subr.mxu0 0.0
        %672 = vmatpush1.msra.mxu0 0.0
        %673 = vmatprep.subr.mxu0 0.0
        %674 = vmatpush1.msra.mxu0 0.0
        %675 = vmatprep.subr.mxu0 0.0
        %676 = vmatpush1.msra.mxu0 0.0
        %677 = vmatprep.subr.mxu0 0.0
        %678 = vmatpush1.msra.mxu0 0.0
        %679 = vmatprep.subr.mxu0 0.0
        %680 = vmatpush1.msra.mxu0 0.0
        %681 = vmatprep.subr.mxu0 0.0
        %682 = vmatpush1.msra.mxu0 0.0
        %683 = vmatprep.subr.mxu0 0.0
        %684 = vmatpush1.msra.mxu0 0.0
        %685 = vmatprep.subr.mxu0 0.0
        %686 = vmatpush1.msra.mxu0 0.0
        %687 = vmatprep.subr.mxu0 0.0
        %688 = vmatpush1.msra.mxu0 0.0
        %689 = vmatprep.subr.mxu0 0.0
        %690 = vmatpush1.msra.mxu0 0.0
        %691 = vmatprep.subr.mxu0 0.0
        %692 = vmatpush1.msra.mxu0 0.0
        %693 = vmatprep.subr.mxu0 0.0
        %694 = vmatpush1.msra.mxu0 0.0
        %695 = vmatprep.subr.mxu0 0.0
        %696 = vmatpush1.msra.mxu0 0.0
        %697 = vmatprep.subr.mxu0 0.0
        %698 = vmatpush1.msra.mxu0 0.0
        %699 = vmatprep.subr.mxu0 0.0
        %700 = vmatpush1.msra.mxu0 0.0
        %701 = vmatprep.subr.mxu0 0.0
        %702 = vmatpush1.msra.mxu0 0.0
        %703 = vmatprep.subr.mxu0 0.0
        %704 = vmatpush1.msra.mxu0 0.0
        %705 = vmatprep.subr.mxu0 0.0
        %706 = vmatpush1.msra.mxu0 0.0
        %707 = vmatprep.subr.mxu0 0.0
        %708 = vmatpush1.msra.mxu0 0.0
        %709 = vmatprep.subr.mxu0 0.0
        %710 = vmatpush1.msra.mxu0 0.0
        %711 = vmatprep.subr.mxu0 0.0
        %712 = vmatpush1.msra.mxu0 0.0
        %713 = vmatprep.subr.mxu0 0.0
        %714 = vmatpush1.msra.mxu0 0.0
        %715 = vmatprep.subr.mxu0 0.0
        %716 = vmatpush1.msra.mxu0 0.0
        %717 = vmatprep.subr.mxu0 0.0
        %718 = vmatpush1.msra.mxu0 0.0
        %719 = vmatprep.subr.mxu0 0.0
        %720 = vmatpush1.msra.mxu0 0.0
        %721 = vmatprep.mubr.f32.mxu0 0.0
        %722 = vmatmul.mubr.f32.gmra.mrb[0].mxu0 %v655
        %v723 = vpop.f32.mrb[0].mxu0
        %v724 = vadd.f32 0.0, %v723
        %v725 = vpop.f32.mrb[0].mxu0
        %726 = vdwg.mxu0
        %v727 = vmul.f32 %v724, 0.25
        %v728 = vadd.f32 %v727, %v215
        %v729 = vsel %vm560, %v728, -inf
        %730 = vmax.xlane.f32.xlu0 %v729
        %v731 = vpop.xlane.xlu0 %730
        %v732 = vsub.f32 %v728, %v731
        %v733 = vmul.f32 %v732, 1.442695
        %v734 = vpow.pop %v733
        %v735 = vsel %vm560, %v734, 0.0
        %736 = vadd.xlane.f32.xlu0 %v735
        %v737 = vpop.xlane.xlu0 %736
        %v738 = vrcp.pop %v737
        %v739 = vmul.f32 %v734, %v738
        %v741 = vsel %vm560, %v739, 0
        %v744 = vsel %vm560, %v476, 0
        %v747 = vsel %vm560, %v481, 0
        %749 = vmatprep.subr.mxu0 0.0
        %750 = vmatpush1.xpose.msra.mxu0 %v744
        %751 = vmatprep.subr.mxu0 0.0
        %752 = vmatpush1.xpose.msra.mxu0 %v747
        %753 = vmatprep.subr.mxu0 0.0
        %754 = vmatpush1.xpose.msra.mxu0 0.0
        %755 = vmatprep.subr.mxu0 0.0
        %756 = vmatpush1.xpose.msra.mxu0 0.0
        %757 = vmatprep.subr.mxu0 0.0
        %758 = vmatpush1.xpose.msra.mxu0 0.0
        %759 = vmatprep.subr.mxu0 0.0
        %760 = vmatpush1.xpose.msra.mxu0 0.0
        %761 = vmatprep.subr.mxu0 0.0
        %762 = vmatpush1.xpose.msra.mxu0 0.0
        %763 = vmatprep.subr.mxu0 0.0
        %764 = vmatpush1.xpose.msra.mxu0 0.0
        %765 = vmatprep.subr.mxu0 0.0
        %766 = vmatpush1.xpose.msra.mxu0 0.0
        %767 = vmatprep.subr.mxu0 0.0
        %768 = vmatpush1.xpose.msra.mxu0 0.0
        %769 = vmatprep.subr.mxu0 0.0
        %770 = vmatpush1.xpose.msra.mxu0 0.0
        %771 = vmatprep.subr.mxu0 0.0
        %772 = vmatpush1.xpose.msra.mxu0 0.0
        %773 = vmatprep.subr.mxu0 0.0
        %774 = vmatpush1.xpose.msra.mxu0 0.0
        %775 = vmatprep.subr.mxu0 0.0
        %776 = vmatpush1.xpose.msra.mxu0 0.0
        %777 = vmatprep.subr.mxu0 0.0
        %778 = vmatpush1.xpose.msra.mxu0 0.0
        %779 = vmatprep.subr.mxu0 0.0
        %780 = vmatpush1.xpose.msra.mxu0 0.0
        %781 = vmatprep.subr.mxu0 0.0
        %782 = vmatpush1.xpose.msra.mxu0 0.0
        %783 = vmatprep.subr.mxu0 0.0
        %784 = vmatpush1.xpose.msra.mxu0 0.0
        %785 = vmatprep.subr.mxu0 0.0
        %786 = vmatpush1.xpose.msra.mxu0 0.0
        %787 = vmatprep.subr.mxu0 0.0
        %788 = vmatpush1.xpose.msra.mxu0 0.0
        %789 = vmatprep.subr.mxu0 0.0
        %790 = vmatpush1.xpose.msra.mxu0 0.0
        %791 = vmatprep.subr.mxu0 0.0
        %792 = vmatpush1.xpose.msra.mxu0 0.0
        %793 = vmatprep.subr.mxu0 0.0
        %794 = vmatpush1.xpose.msra.mxu0 0.0
        %795 = vmatprep.subr.mxu0 0.0
        %796 = vmatpush1.xpose.msra.mxu0 0.0
        %797 = vmatprep.subr.mxu0 0.0
        %798 = vmatpush1.xpose.msra.mxu0 0.0
        %799 = vmatprep.subr.mxu0 0.0
        %800 = vmatpush1.xpose.msra.mxu0 0.0
        %801 = vmatprep.subr.mxu0 0.0
        %802 = vmatpush1.xpose.msra.mxu0 0.0
        %803 = vmatprep.subr.mxu0 0.0
        %804 = vmatpush1.xpose.msra.mxu0 0.0
        %805 = vmatprep.subr.mxu0 0.0
        %806 = vmatpush1.xpose.msra.mxu0 0.0
        %807 = vmatprep.subr.mxu0 0.0
        %808 = vmatpush1.xpose.msra.mxu0 0.0
        %809 = vmatprep.subr.mxu0 0.0
        %810 = vmatpush1.xpose.msra.mxu0 0.0
        %811 = vmatprep.subr.mxu0 0.0
        %812 = vmatpush1.xpose.msra.mxu0 0.0
        %813 = vmatprep.mubr.f32.mxu0 0.0
        %814 = vmatmul.mubr.f32.gmra.mrb[0].mxu0 %v741
        %v815 = vpop.f32.mrb[0].mxu0
        %v816 = vadd.f32 0.0, %v815
        %v817 = vpop.f32.mrb[0].mxu0
        %818 = vdwg.mxu0
        %v819 = vld [vmem:[%s2 + $0xb0] sm:$0xff]
        %v820 = vld [vmem:[%s2 + $0xb8] sm:$0xff]
        %v822 = vsel %vm484, %v816, 0
        %824 = vmatprep.subr.mxu0 0.0
        %825 = vmatpush1.msra.mxu0 %v819
        %826 = vmatprep.subr.mxu0 0.0
        %827 = vmatpush1.msra.mxu0 %v820
        %828 = vmatprep.subr.mxu0 0.0
        %829 = vmatpush1.msra.mxu0 0.0
        %830 = vmatprep.subr.mxu0 0.0
        %831 = vmatpush1.msra.mxu0 0.0
        %832 = vmatprep.subr.mxu0 0.0
        %833 = vmatpush1.msra.mxu0 0.0
        %834 = vmatprep.subr.mxu0 0.0
        %835 = vmatpush1.msra.mxu0 0.0
        %836 = vmatprep.subr.mxu0 0.0
        %837 = vmatpush1.msra.mxu0 0.0
        %838 = vmatprep.subr.mxu0 0.0
        %839 = vmatpush1.msra.mxu0 0.0
        %840 = vmatprep.subr.mxu0 0.0
        %841 = vmatpush1.msra.mxu0 0.0
        %842 = vmatprep.subr.mxu0 0.0
        %843 = vmatpush1.msra.mxu0 0.0
        %844 = vmatprep.subr.mxu0 0.0
        %845 = vmatpush1.msra.mxu0 0.0
        %846 = vmatprep.subr.mxu0 0.0
        %847 = vmatpush1.msra.mxu0 0.0
        %848 = vmatprep.subr.mxu0 0.0
        %849 = vmatpush1.msra.mxu0 0.0
        %850 = vmatprep.subr.mxu0 0.0
        %851 = vmatpush1.msra.mxu0 0.0
        %852 = vmatprep.subr.mxu0 0.0
        %853 = vmatpush1.msra.mxu0 0.0
        %854 = vmatprep.subr.mxu0 0.0
        %855 = vmatpush1.msra.mxu0 0.0
        %856 = vmatprep.subr.mxu0 0.0
        %857 = vmatpush1.msra.mxu0 0.0
        %858 = vmatprep.subr.mxu0 0.0
        %859 = vmatpush1.msra.mxu0 0.0
        %860 = vmatprep.subr.mxu0 0.0
        %861 = vmatpush1.msra.mxu0 0.0
        %862 = vmatprep.subr.mxu0 0.0
        %863 = vmatpush1.msra.mxu0 0.0
        %864 = vmatprep.subr.mxu0 0.0
        %865 = vmatpush1.msra.mxu0 0.0
        %866 = vmatprep.subr.mxu0 0.0
        %867 = vmatpush1.msra.mxu0 0.0
        %868 = vmatprep.subr.mxu0 0.0
        %869 = vmatpush1.msra.mxu0 0.0
        %870 = vmatprep.subr.mxu0 0.0
        %871 = vmatpush1.msra.mxu0 0.0
        %872 = vmatprep.subr.mxu0 0.0
        %873 = vmatpush1.msra.mxu0 0.0
        %874 = vmatprep.subr.mxu0 0.0
        %875 = vmatpush1.msra.mxu0 0.0
        %876 = vmatprep.subr.mxu0 0.0
        %877 = vmatpush1.msra.mxu0 0.0
        %878 = vmatprep.subr.mxu0 0.0
        %879 = vmatpush1.msra.mxu0 0.0
        %880 = vmatprep.subr.mxu0 0.0
        %881 = vmatpush1.msra.mxu0 0.0
        %882 = vmatprep.subr.mxu0 0.0
        %883 = vmatpush1.msra.mxu0 0.0
        %884 = vmatprep.subr.mxu0 0.0
        %885 = vmatpush1.msra.mxu0 0.0
        %886 = vmatprep.subr.mxu0 0.0
        %887 = vmatpush1.msra.mxu0 0.0
        %888 = vmatprep.mubr.f32.mxu0 0.0
        %889 = vmatmul.mubr.f32.gmra.mrb[0].mxu0 %v822
        %v890 = vpop.f32.mrb[0].mxu0
        %v891 = vadd.f32 0.0, %v890
        %v892 = vpop.f32.mrb[0].mxu0
        %893 = vdwg.mxu0
        %v895 = vsel %vm484, %v648, 0
        %897 = vmatprep.subr.mxu0 0.0
        %898 = vmatpush1.msra.mxu0 %v651
        %899 = vmatprep.subr.mxu0 0.0
        %900 = vmatpush1.msra.mxu0 %v652
        %901 = vmatprep.subr.mxu0 0.0
        %902 = vmatpush1.msra.mxu0 0.0
        %903 = vmatprep.subr.mxu0 0.0
        %904 = vmatpush1.msra.mxu0 0.0
        %905 = vmatprep.subr.mxu0 0.0
        %906 = vmatpush1.msra.mxu0 0.0
        %907 = vmatprep.subr.mxu0 0.0
        %908 = vmatpush1.msra.mxu0 0.0
        %909 = vmatprep.subr.mxu0 0.0
        %910 = vmatpush1.msra.mxu0 0.0
        %911 = vmatprep.subr.mxu0 0.0
        %912 = vmatpush1.msra.mxu0 0.0
        %913 = vmatprep.subr.mxu0 0.0
        %914 = vmatpush1.msra.mxu0 0.0
        %915 = vmatprep.subr.mxu0 0.0
        %916 = vmatpush1.msra.mxu0 0.0
        %917 = vmatprep.subr.mxu0 0.0
        %918 = vmatpush1.msra.mxu0 0.0
        %919 = vmatprep.subr.mxu0 0.0
        %920 = vmatpush1.msra.mxu0 0.0
        %921 = vmatprep.subr.mxu0 0.0
        %922 = vmatpush1.msra.mxu0 0.0
        %923 = vmatprep.subr.mxu0 0.0
        %924 = vmatpush1.msra.mxu0 0.0
        %925 = vmatprep.subr.mxu0 0.0
        %926 = vmatpush1.msra.mxu0 0.0
        %927 = vmatprep.subr.mxu0 0.0
        %928 = vmatpush1.msra.mxu0 0.0
        %929 = vmatprep.subr.mxu0 0.0
        %930 = vmatpush1.msra.mxu0 0.0
        %931 = vmatprep.subr.mxu0 0.0
        %932 = vmatpush1.msra.mxu0 0.0
        %933 = vmatprep.subr.mxu0 0.0
        %934 = vmatpush1.msra.mxu0 0.0
        %935 = vmatprep.subr.mxu0 0.0
        %936 = vmatpush1.msra.mxu0 0.0
        %937 = vmatprep.subr.mxu0 0.0
        %938 = vmatpush1.msra.mxu0 0.0
        %939 = vmatprep.subr.mxu0 0.0
        %940 = vmatpush1.msra.mxu0 0.0
        %941 = vmatprep.subr.mxu0 0.0
        %942 = vmatpush1.msra.mxu0 0.0
        %943 = vmatprep.subr.mxu0 0.0
        %944 = vmatpush1.msra.mxu0 0.0
        %945 = vmatprep.subr.mxu0 0.0
        %946 = vmatpush1.msra.mxu0 0.0
        %947 = vmatprep.subr.mxu0 0.0
        %948 = vmatpush1.msra.mxu0 0.0
        %949 = vmatprep.subr.mxu0 0.0
        %950 = vmatpush1.msra.mxu0 0.0
        %951 = vmatprep.subr.mxu0 0.0
        %952 = vmatpush1.msra.mxu0 0.0
        %953 = vmatprep.subr.mxu0 0.0
        %954 = vmatpush1.msra.mxu0 0.0
        %955 = vmatprep.subr.mxu0 0.0
        %956 = vmatpush1.msra.mxu0 0.0
        %957 = vmatprep.subr.mxu0 0.0
        %958 = vmatpush1.msra.mxu0 0.0
        %959 = vmatprep.subr.mxu0 0.0
        %960 = vmatpush1.msra.mxu0 0.0
        %961 = vmatprep.mubr.f32.mxu0 0.0
        %962 = vmatmul.mubr.f32.gmra.mrb[0].mxu0 %v895
        %v963 = vpop.f32.mrb[0].mxu0
        %v964 = vadd.f32 %v891, %v963
        %v965 = vpop.f32.mrb[0].mxu0
        %966 = vdwg.mxu0
        %v967 = vld [vmem:[%s3 + $0x1] sm:$0x1]
        %v968 = vlaneseq
        %v969 = vshrl.u32 %v968, 7
        %v970 = vsub.s32 0, %v969
        %v971 = vrot.slane %v967, %v970
        %v972 = vadd.f32 %v964, %v971
        %v973 = vadd.f32 %v206, %v972
        %v974 = vld [vmem:[%s3 + $0x2] sm:$0x1]
        %v975 = vld [vmem:[%s3 + $0x3] sm:$0x1]
        %v976 = vsel %vm225, %v973, 0.0
        %977 = vadd.xlane.f32.xlu0 %v976
        %v978 = vpop.xlane.xlu0 %977
        %v979 = vrcp.pop 32.0
        %v980 = vmul.f32 %v978, %v979
        %v981 = vsub.f32 %v973, %v980
        %v982 = vmul.f32 %v981, %v981
        %v983 = vsel %vm225, %v982, 0.0
        %984 = vadd.xlane.f32.xlu0 %v983
        %v985 = vpop.xlane.xlu0 %984
        %v986 = vmul.f32 %v985, %v979
        %v987 = vadd.f32 %v986, 1e-12
        %v988 = vrsqrt.pop %v987
        %v989 = vmul.f32 %v981, %v988
        %v990 = vlaneseq
        %v991 = vshrl.u32 %v990, 7
        %v992 = vsub.s32 0, %v991
        %v993 = vrot.slane %v974, %v992
        %v994 = vmul.f32 %v989, %v993
        %v995 = vlaneseq
        %v996 = vshrl.u32 %v995, 7
        %v997 = vsub.s32 0, %v996
        %v998 = vrot.slane %v975, %v997
        %v999 = vadd.f32 %v994, %v998
        %v1000 = vld [vmem:[%s2 + $0xc0] sm:$0xff]
        %v1001 = vld [vmem:[%s2 + $0xc8] sm:$0xff]
        %v1002 = vld [vmem:[%s2 + $0xd0] sm:$0xff]
        %v1003 = vld [vmem:[%s2 + $0xd8] sm:$0xff]
        %v1004 = vld [vmem:[%s3 + $0x4] sm:$0x1]
        %v1005 = vlaneseq
        %v1006 = vshrl.u32 %v1005, 7
        %v1007 = vsub.s32 0, %v1006
        %v1008 = vrot.slane %v1004, %v1007
        %v1010 = vsel %vm225, %v999, 0
        %1012 = vmatprep.subr.mxu0 0.0
        %1013 = vmatpush1.msra.mxu0 %v1000
        %1014 = vmatprep.subr.mxu0 0.0
        %1015 = vmatpush1.msra.mxu0 %v1001
        %1016 = vmatprep.subr.mxu0 0.0
        %1017 = vmatpush1.msra.mxu0 %v1002
        %1018 = vmatprep.subr.mxu0 0.0
        %1019 = vmatpush1.msra.mxu0 %v1003
        %1020 = vmatprep.subr.mxu0 0.0
        %1021 = vmatpush1.msra.mxu0 0.0
        %1022 = vmatprep.subr.mxu0 0.0
        %1023 = vmatpush1.msra.mxu0 0.0
        %1024 = vmatprep.subr.mxu0 0.0
        %1025 = vmatpush1.msra.mxu0 0.0
        %1026 = vmatprep.subr.mxu0 0.0
        %1027 = vmatpush1.msra.mxu0 0.0
        %1028 = vmatprep.subr.mxu0 0.0
        %1029 = vmatpush1.msra.mxu0 0.0
        %1030 = vmatprep.subr.mxu0 0.0
        %1031 = vmatpush1.msra.mxu0 0.0
        %1032 = vmatprep.subr.mxu0 0.0
        %1033 = vmatpush1.msra.mxu0 0.0
        %1034 = vmatprep.subr.mxu0 0.0
        %1035 = vmatpush1.msra.mxu0 0.0
        %1036 = vmatprep.subr.mxu0 0.0
        %1037 = vmatpush1.msra.mxu0 0.0
        %1038 = vmatprep.subr.mxu0 0.0
        %1039 = vmatpush1.msra.mxu0 0.0
        %1040 = vmatprep.subr.mxu0 0.0
        %1041 = vmatpush1.msra.mxu0 0.0
        %1042 = vmatprep.subr.mxu0 0.0
        %1043 = vmatpush1.msra.mxu0 0.0
        %1044 = vmatprep.subr.mxu0 0.0
        %1045 = vmatpush1.msra.mxu0 0.0
        %1046 = vmatprep.subr.mxu0 0.0
        %1047 = vmatpush1.msra.mxu0 0.0
        %1048 = vmatprep.subr.mxu0 0.0
        %1049 = vmatpush1.msra.mxu0 0.0
        %1050 = vmatprep.subr.mxu0 0.0
        %1051 = vmatpush1.msra.mxu0 0.0
        %1052 = vmatprep.subr.mxu0 0.0
        %1053 = vmatpush1.msra.mxu0 0.0
        %1054 = vmatprep.subr.mxu0 0.0
        %1055 = vmatpush1.msra.mxu0 0.0
        %1056 = vmatprep.subr.mxu0 0.0
        %1057 = vmatpush1.msra.mxu0 0.0
        %1058 = vmatprep.subr.mxu0 0.0
        %1059 = vmatpush1.msra.mxu0 0.0
        %1060 = vmatprep.subr.mxu0 0.0
        %1061 = vmatpush1.msra.mxu0 0.0
        %1062 = vmatprep.subr.mxu0 0.0
        %1063 = vmatpush1.msra.mxu0 0.0
        %1064 = vmatprep.subr.mxu0 0.0
        %1065 = vmatpush1.msra.mxu0 0.0
        %1066 = vmatprep.subr.mxu0 0.0
        %1067 = vmatpush1.msra.mxu0 0.0
        %1068 = vmatprep.subr.mxu0 0.0
        %1069 = vmatpush1.msra.mxu0 0.0
        %1070 = vmatprep.subr.mxu0 0.0
        %1071 = vmatpush1.msra.mxu0 0.0
        %1072 = vmatprep.subr.mxu0 0.0
        %1073 = vmatpush1.msra.mxu0 0.0
        %1074 = vmatprep.subr.mxu0 0.0
        %1075 = vmatpush1.msra.mxu0 0.0
        %1076 = vmatprep.mubr.f32.mxu0 0.0
        %1077 = vmatmul.mubr.f32.gmra.mrb[0].mxu0 %v1010
        %v1078 = vpop.f32.mrb[0].mxu0
        %v1079 = vadd.f32 %v1008, %v1078
        %v1080 = vpop.f32.mrb[0].mxu0
        %1081 = vdwg.mxu0
        %v1082 = vmul.f32 %v1079, %v1079
        %v1083 = vmul.f32 %v1079, %v1082
        %v1084 = vmul.f32 %v1083, 0.044715
        %v1085 = vadd.f32 %v1079, %v1084
        %v1086 = vmul.f32 %v1085, 0.7978846
        %v1087 = vtanh.pop %v1086
        %v1088 = vadd.f32 %v1087, 1.0
        %v1089 = vmul.f32 %v1088, 0.5
        %v1090 = vmul.f32 %v1079, %v1089
        %v1091 = vld [vmem:[%s2 + $0xe0] sm:$0xff]
        %v1092 = vld [vmem:[%s2 + $0xe8] sm:$0xff]
        %v1093 = vld [vmem:[%s2 + $0xf0] sm:$0xff]
        %v1094 = vld [vmem:[%s2 + $0xf8] sm:$0xff]
        %v1095 = vld [vmem:[%s2 + $0x100] sm:$0xff]
        %v1096 = vld [vmem:[%s2 + $0x108] sm:$0xff]
        %v1097 = vld [vmem:[%s2 + $0x110] sm:$0xff]
        %v1098 = vld [vmem:[%s2 + $0x118] sm:$0xff]
        %v1099 = vld [vmem:[%s2 + $0x120] sm:$0xff]
        %v1100 = vld [vmem:[%s2 + $0x128] sm:$0xff]
        %v1101 = vld [vmem:[%s2 + $0x130] sm:$0xff]
        %v1102 = vld [vmem:[%s2 + $0x138] sm:$0xff]
        %v1103 = vld [vmem:[%s2 + $0x140] sm:$0xff]
        %v1104 = vld [vmem:[%s2 + $0x148] sm:$0xff]
        %v1105 = vld [vmem:[%s2 + $0x150] sm:$0xff]
        %v1106 = vld [vmem:[%s2 + $0x158] sm:$0xff]
        %v1107 = vld [vmem:[%s3 + $0x5] sm:$0x1]
        %v1108 = vlaneseq
        %v1109 = vshrl.u32 %v1108, 7
        %v1110 = vsub.s32 0, %v1109
        %v1111 = vrot.slane %v1107, %v1110
        %1112 = vmatprep.subr.mxu0 0.0
        %1113 = vmatpush1.msra.mxu0 %v1091
        %1114 = vmatprep.subr.mxu0 0.0
        %1115 = vmatpush1.msra.mxu0 %v1092
        %1116 = vmatprep.subr.mxu0 0.0
        %1117 = vmatpush1.msra.mxu0 %v1093
        %1118 = vmatprep.subr.mxu0 0.0
        %1119 = vmatpush1.msra.mxu0 %v1094
        %1120 = vmatprep.subr.mxu0 0.0
        %1121 = vmatpush1.msra.mxu0 %v1095
        %1122 = vmatprep.subr.mxu0 0.0
        %1123 = vmatpush1.msra.mxu0 %v1096
        %1124 = vmatprep.subr.mxu0 0.0
        %1125 = vmatpush1.msra.mxu0 %v1097
        %1126 = vmatprep.subr.mxu0 0.0
        %1127 = vmatpush1.msra.mxu0 %v1098
        %1128 = vmatprep.subr.mxu0 0.0
        %1129 = vmatpush1.msra.mxu0 %v1099
        %1130 = vmatprep.subr.mxu0 0.0
        %1131 = vmatpush1.msra.mxu0 %v1100
        %1132 = vmatprep.subr.mxu0 0.0
        %1133 = vmatpush1.msra.mxu0 %v1101
        %1134 = vmatprep.subr.mxu0 0.0
        %1135 = vmatpush1.msra.mxu0 %v1102
        %1136 = vmatprep.subr.mxu0 0.0
        %1137 = vmatpush1.msra.mxu0 %v1103
        %1138 = vmatprep.subr.mxu0 0.0
        %1139 = vmatpush1.msra.mxu0 %v1104
        %1140 = vmatprep.subr.mxu0 0.0
        %1141 = vmatpush1.msra.mxu0 %v1105
        %1142 = vmatprep.subr.mxu0 0.0
        %1143 = vmatpush1.msra.mxu0 %v1106
        %1144 = vmatprep.subr.mxu0 0.0
        %1145 = vmatpush1.msra.mxu0 0.0
        %1146 = vmatprep.subr.mxu0 0.0
        %1147 = vmatpush1.msra.mxu0 0.0
        %1148 = vmatprep.subr.mxu0 0.0
        %1149 = vmatpush1.msra.mxu0 0.0
        %1150 = vmatprep.subr.mxu0 0.0
        %1151 = vmatpush1.msra.mxu0 0.0
        %1152 = vmatprep.subr.mxu0 0.0
        %1153 = vmatpush1.msra.mxu0 0.0
        %1154 = vmatprep.subr.mxu0 0.0
        %1155 = vmatpush1.msra.mxu0 0.0
        %1156 = vmatprep.subr.mxu0 0.0
        %1157 = vmatpush1.msra.mxu0 0.0
        %1158 = vmatprep.subr.mxu0 0.0
        %1159 = vmatpush1.msra.mxu0 0.0
        %1160 = vmatprep.subr.mxu0 0.0
        %1161 = vmatpush1.msra.mxu0 0.0
        %1162 = vmatprep.subr.mxu0 0.0
        %1163 = vmatpush1.msra.mxu0 0.0
        %1164 = vmatprep.subr.mxu0 0.0
        %1165 = vmatpush1.msra.mxu0 0.0
        %1166 = vmatprep.subr.mxu0 0.0
        %1167 = vmatpush1.msra.mxu0 0.0
        %1168 = vmatprep.subr.mxu0 0.0
        %1169 = vmatpush1.msra.mxu0 0.0
        %1170 = vmatprep.subr.mxu0 0.0
        %1171 = vmatpush1.msra.mxu0 0.0
        %1172 = vmatprep.subr.mxu0 0.0
        %1173 = vmatpush1.msra.mxu0 0.0
        %1174 = vmatprep.subr.mxu0 0.0
        %1175 = vmatpush1.msra.mxu0 0.0
        %1176 = vmatprep.mubr.f32.mxu0 0.0
        %1177 = vmatmul.mubr.f32.gmra.mrb[0].mxu0 %v1090
        %v1178 = vpop.f32.mrb[0].mxu0
        %v1179 = vadd.f32 %v1111, %v1178
        %v1180 = vpop.f32.mrb[0].mxu0
        %1181 = vdwg.mxu0
        %v1182 = vadd.f32 %v999, %v1179
        %v1183 = vld [vmem:[%s3 + $0x6] sm:$0x1]
        %v1184 = vld [vmem:[%s3 + $0x7] sm:$0x1]
        %v1185 = vsel %vm225, %v1182, 0.0
        %1186 = vadd.xlane.f32.xlu0 %v1185
        %v1187 = vpop.xlane.xlu0 %1186
        %v1188 = vmul.f32 %v1187, %v979
        %v1189 = vsub.f32 %v1182, %v1188
        %v1190 = vmul.f32 %v1189, %v1189
        %v1191 = vsel %vm225, %v1190, 0.0
        %1192 = vadd.xlane.f32.xlu0 %v1191
        %v1193 = vpop.xlane.xlu0 %1192
        %v1194 = vmul.f32 %v1193, %v979
        %v1195 = vadd.f32 %v1194, 1e-12
        %v1196 = vrsqrt.pop %v1195
        %v1197 = vmul.f32 %v1189, %v1196
        %v1198 = vlaneseq
        %v1199 = vshrl.u32 %v1198, 7
        %v1200 = vsub.s32 0, %v1199
        %v1201 = vrot.slane %v1183, %v1200
        %v1202 = vmul.f32 %v1197, %v1201
        %v1203 = vlaneseq
        %v1204 = vshrl.u32 %v1203, 7
        %v1205 = vsub.s32 0, %v1204
        %v1206 = vrot.slane %v1184, %v1205
        %v1207 = vadd.f32 %v1202, %v1206
        %v1208 = vld [vmem:[%s2 + $0x160] sm:$0xff]
        %v1209 = vld [vmem:[%s2 + $0x168] sm:$0xff]
        %v1210 = vld [vmem:[%s2 + $0x170] sm:$0xff]
        %v1211 = vld [vmem:[%s2 + $0x178] sm:$0xff]
        %v1212 = vld [vmem:[%s3 + $0x8] sm:$0x1]
        %v1214 = vsel %vm225, %v1207, 0
        %1216 = vmatprep.subr.mxu0 0.0
        %1217 = vmatpush1.msra.mxu0 %v1208
        %1218 = vmatprep.subr.mxu0 0.0
        %1219 = vmatpush1.msra.mxu0 %v1209
        %1220 = vmatprep.subr.mxu0 0.0
        %1221 = vmatpush1.msra.mxu0 %v1210
        %1222 = vmatprep.subr.mxu0 0.0
        %1223 = vmatpush1.msra.mxu0 %v1211
        %1224 = vmatprep.subr.mxu0 0.0
        %1225 = vmatpush1.msra.mxu0 0.0
        %1226 = vmatprep.subr.mxu0 0.0
        %1227 = vmatpush1.msra.mxu0 0.0
        %1228 = vmatprep.subr.mxu0 0.0
        %1229 = vmatpush1.msra.mxu0 0.0
        %1230 = vmatprep.subr.mxu0 0.0
        %1231 = vmatpush1.msra.mxu0 0.0
        %1232 = vmatprep.subr.mxu0 0.0
        %1233 = vmatpush1.msra.mxu0 0.0
        %1234 = vmatprep.subr.mxu0 0.0
        %1235 = vmatpush1.msra.mxu0 0.0
        %1236 = vmatprep.subr.mxu0 0.0
        %1237 = vmatpush1.msra.mxu0 0.0
        %1238 = vmatprep.subr.mxu0 0.0
        %1239 = vmatpush1.msra.mxu0 0.0
        %1240 = vmatprep.subr.mxu0 0.0
        %1241 = vmatpush1.msra.mxu0 0.0
        %1242 = vmatprep.subr.mxu0 0.0
        %1243 = vmatpush1.msra.mxu0 0.0
        %1244 = vmatprep.subr.mxu0 0.0
        %1245 = vmatpush1.msra.mxu0 0.0
        %1246 = vmatprep.subr.mxu0 0.0
        %1247 = vmatpush1.msra.mxu0 0.0
        %1248 = vmatprep.subr.mxu0 0.0
        %1249 = vmatpush1.msra.mxu0 0.0
        %1250 = vmatprep.subr.mxu0 0.0
        %1251 = vmatpush1.msra.mxu0 0.0
        %1252 = vmatprep.subr.mxu0 0.0
        %1253 = vmatpush1.msra.mxu0 0.0
        %1254 = vmatprep.subr.mxu0 0.0
        %1255 = vmatpush1.msra.mxu0 0.0
        %1256 = vmatprep.subr.mxu0 0.0
        %1257 = vmatpush1.msra.mxu0 0.0
        %1258 = vmatprep.subr.mxu0 0.0
        %1259 = vmatpush1.msra.mxu0 0.0
        %1260 = vmatprep.subr.mxu0 0.0
        %1261 = vmatpush1.msra.mxu0 0.0
        %1262 = vmatprep.subr.mxu0 0.0
        %1263 = vmatpush1.msra.mxu0 0.0
        %1264 = vmatprep.subr.mxu0 0.0
        %1265 = vmatpush1.msra.mxu0 0.0
        %1266 = vmatprep.subr.mxu0 0.0
        %1267 = vmatpush1.msra.mxu0 0.0
        %1268 = vmatprep.subr.mxu0 0.0
        %1269 = vmatpush1.msra.mxu0 0.0
        %1270 = vmatprep.subr.mxu0 0.0
        %1271 = vmatpush1.msra.mxu0 0.0
        %1272 = vmatprep.subr.mxu0 0.0
        %1273 = vmatpush1.msra.mxu0 0.0
        %1274 = vmatprep.subr.mxu0 0.0
        %1275 = vmatpush1.msra.mxu0 0.0
        %1276 = vmatprep.subr.mxu0 0.0
        %1277 = vmatpush1.msra.mxu0 0.0
        %1278 = vmatprep.subr.mxu0 0.0
        %1279 = vmatpush1.msra.mxu0 0.0
        %1280 = vmatprep.mubr.f32.mxu0 0.0
        %1281 = vmatmul.mubr.f32.gmra.mrb[0].mxu0 %v1214
        %v1282 = vpop.f32.mrb[0].mxu0
        %v1283 = vadd.f32 %v1212, %v1282
        %v1284 = vpop.f32.mrb[0].mxu0
        %1285 = vdwg.mxu0
        %v1286 = vtanh.pop %v1283
        %v1287 = vld [vmem:[%s2 + $0x180] sm:$0xff]
        %v1288 = vld [vmem:[%s2 + $0x188] sm:$0xff]
        %v1289 = vld [vmem:[%s2 + $0x190] sm:$0xff]
        %v1290 = vld [vmem:[%s2 + $0x198] sm:$0xff]
        %v1291 = vld [vmem:[%s3 + $0x9] sm:$0x1]
        %v1293 = vsel %vm225, %v1286, 0
        %1295 = vmatprep.subr.mxu0 0.0
        %1296 = vmatpush1.msra.mxu0 %v1287
        %1297 = vmatprep.subr.mxu0 0.0
        %1298 = vmatpush1.msra.mxu0 %v1288
        %1299 = vmatprep.subr.mxu0 0.0
        %1300 = vmatpush1.msra.mxu0 %v1289
        %1301 = vmatprep.subr.mxu0 0.0
        %1302 = vmatpush1.msra.mxu0 %v1290
        %1303 = vmatprep.subr.mxu0 0.0
        %1304 = vmatpush1.msra.mxu0 0.0
        %1305 = vmatprep.subr.mxu0 0.0
        %1306 = vmatpush1.msra.mxu0 0.0
        %1307 = vmatprep.subr.mxu0 0.0
        %1308 = vmatpush1.msra.mxu0 0.0
        %1309 = vmatprep.subr.mxu0 0.0
        %1310 = vmatpush1.msra.mxu0 0.0
        %1311 = vmatprep.subr.mxu0 0.0
        %1312 = vmatpush1.msra.mxu0 0.0
        %1313 = vmatprep.subr.mxu0 0.0
        %1314 = vmatpush1.msra.mxu0 0.0
        %1315 = vmatprep.subr.mxu0 0.0
        %1316 = vmatpush1.msra.mxu0 0.0
        %1317 = vmatprep.subr.mxu0 0.0
        %1318 = vmatpush1.msra.mxu0 0.0
        %1319 = vmatprep.subr.mxu0 0.0
        %1320 = vmatpush1.msra.mxu0 0.0
        %1321 = vmatprep.subr.mxu0 0.0
        %1322 = vmatpush1.msra.mxu0 0.0
        %1323 = vmatprep.subr.mxu0 0.0
        %1324 = vmatpush1.msra.mxu0 0.0
        %1325 = vmatprep.subr.mxu0 0.0
        %1326 = vmatpush1.msra.mxu0 0.0
        %1327 = vmatprep.subr.mxu0 0.0
        %1328 = vmatpush1.msra.mxu0 0.0
        %1329 = vmatprep.subr.mxu0 0.0
        %1330 = vmatpush1.msra.mxu0 0.0
        %1331 = vmatprep.subr.mxu0 0.0
        %1332 = vmatpush1.msra.mxu0 0.0
        %1333 = vmatprep.subr.mxu0 0.0
        %1334 = vmatpush1.msra.mxu0 0.0
        %1335 = vmatprep.subr.mxu0 0.0
        %1336 = vmatpush1.msra.mxu0 0.0
        %1337 = vmatprep.subr.mxu0 0.0
        %1338 = vmatpush1.msra.mxu0 0.0
        %1339 = vmatprep.subr.mxu0 0.0
        %1340 = vmatpush1.msra.mxu0 0.0
        %1341 = vmatprep.subr.mxu0 0.0
        %1342 = vmatpush1.msra.mxu0 0.0
        %1343 = vmatprep.subr.mxu0 0.0
        %1344 = vmatpush1.msra.mxu0 0.0
        %1345 = vmatprep.subr.mxu0 0.0
        %1346 = vmatpush1.msra.mxu0 0.0
        %1347 = vmatprep.subr.mxu0 0.0
        %1348 = vmatpush1.msra.mxu0 0.0
        %1349 = vmatprep.subr.mxu0 0.0
        %1350 = vmatpush1.msra.mxu0 0.0
        %1351 = vmatprep.subr.mxu0 0.0
        %1352 = vmatpush1.msra.mxu0 0.0
        %1353 = vmatprep.subr.mxu0 0.0
        %1354 = vmatpush1.msra.mxu0 0.0
        %1355 = vmatprep.subr.mxu0 0.0
        %1356 = vmatpush1.msra.mxu0 0.0
        %1357 = vmatprep.subr.mxu0 0.0
        %1358 = vmatpush1.msra.mxu0 0.0
        %1359 = vmatprep.mubr.f32.mxu0 0.0
        %1360 = vmatmul.mubr.f32.gmra.mrb[0].mxu0 %v1293
        %v1361 = vpop.f32.mrb[0].mxu0
        %v1362 = vadd.f32 %v1291, %v1361
        %v1363 = vpop.f32.mrb[0].mxu0
        %1364 = vdwg.mxu0
        %1365 = vst [vmem:[%s201] sm:$0x1] %v1362
        %s1366 = sand.u32 %s116, 1
        %s1367 = scalar_lea.sflag [#allocation3], %s1366
        %s1368 = sand.u32 %s116, 1
        %s1369 = scalar_lea.vmem [#allocation5], %s1368
        // Predicated region
        $region41: #{bert_classifier_forward.1} parent=35 // pred_check
          %p1370 = pneg %p126
        $region42: #{bert_classifier_forward.1} parent=35 // pred_check_branch
          %1372 = sbr.rel (%p1370) target = $region44
        $region43: #{bert_classifier_forward.1} parent=35 // pred_region
          %s1374 = ssub.s32 16, 16
          %1375 = vsyncadd %s1367, %s1374
          %s1376 = smul.addr %s19, 16
          %s1377 = scalar_lea.hbm %s4, %s1376
          %s1379 = sshll.u32 %s1369, 4
          %s1380 = int_to_ptr.vmem [resolvable:$true] %s1379
          %1382 = dma.vmem_to_hbm [thread:$0]  %s1380, 16, %s1377, %s1367
        $region44: #{bert_classifier_forward.1} parent=35 // pred_fallthru
          _
      $region36: #{bert_classifier_forward.1} parent=5 // pred_fallthru
        _
      %p1383 = scmp.le.s32.totalorder 2, %s14
      // Predicated region
      $region45: #{bert_classifier_forward.1} parent=5 // pred_check
        %p1384 = pneg %p1383
      $region46: #{bert_classifier_forward.1} parent=5 // pred_check_branch
        %1386 = sbr.rel (%p1384) target = $region48
      $region47: #{bert_classifier_forward.1} parent=5 // pred_region
        %s1387 = ssub.s32 %s14, 2
        // Predicated region
        $region49: #{bert_classifier_forward.1} parent=47 // pred_check
          %p1388 = pneg %p132
        $region50: #{bert_classifier_forward.1} parent=47 // pred_check_branch
          %1390 = sbr.rel (%p1388) target = $region52
        $region51: #{bert_classifier_forward.1} parent=47 // pred_region
          %s1391 = sand.u32 %s117, 1
          %s1392 = scalar_lea.sflag [#allocation3], %s1391
          %s1393 = sand.u32 %s117, 1
          %s1394 = scalar_lea.vmem [#allocation5], %s1393
          %1395 = dma.done %s1392, 16
        $region52: #{bert_classifier_forward.1} parent=47 // pred_fallthru
          _
      $region48: #{bert_classifier_forward.1} parent=5 // pred_fallthru
        _
    $region6: #{bert_classifier_forward.1} parent=1 // loop_footer
      %s18 = sadd.s32 1, %s14
    $region7: #{bert_classifier_forward.1} parent=1 // loop_footer_branch
      %13 = sbr.rel target = $region3
    $region8: #{bert_classifier_forward.1} parent=1 // loop_exit
      _
    %1396 = vsyncpa [#allocation3], 1
    %s1397 = scalar_lea.sflag [#allocation3], 1
    %1398 = vsyncpa %s1397, 1
    %1399 = vsyncpa [#allocation4], 1
    %s1400 = scalar_lea.sflag [#allocation4], 1
    %1401 = vsyncpa %s1400, 1

</llo_original>
